<compile_context>
chip_gen: v5e
topology: v5e:2x2
jax: 0.10.0
libtpu: 0.0.40
codegen_flags: <defaults>
</compile_context>

<pallas_src>
import functools

import jax
import jax.numpy as jnp
from jax import lax
from jax.experimental import pallas as pl
from jax.experimental.pallas import tpu as pltpu

# ---- model hyperparameters (small, consistent with the module's forward) ----
VOCAB = 64
EMB = 32           # embedding_dim == hidden_dim (required by `rnn_out + x` residual)
HID = 32
NUM_LAYERS = 2
NUM_CLASSES = 16
LN_EPS = 1e-5      # PyTorch nn.LayerNorm default
LANE = 128         # lane-dense padding width for packed weights / outputs

# ------------------------- packed-operand layout maps -------------------------
# f32 slab: one row per small vector, then the embedding table.
F_ROWS = ("b0", "b1", "ln_rnn_g", "ln_rnn_b", "b_cka", "tmod_pad",
          "bsm", "ln_att_g", "ln_att_b", "bo", "ln_out_g", "ln_out_b",
          "bfc", "bcls")
F_VEC_OFF = {name: i for i, name in enumerate(F_ROWS)}
F_EMB_OFF = 16                      # embedding table occupies rows [16, 16+VOCAB)
F_ROWS_TOTAL = F_EMB_OFF + VOCAB    # 80

# bf16 weight slab: row blocks (all 128 lanes wide, unused lanes zero).
W_BLOCKS = (("wih0", EMB), ("whh0", HID), ("wih1", HID), ("whh1", HID),
            ("wcka", HID), ("wsm", LANE), ("wcm_top", HID), ("wo", HID),
            ("wfc", HID), ("wcls", HID))
W_OFF = {}
_off = 0
for _name, _rows in W_BLOCKS:
    W_OFF[_name] = _off
    _off += _rows
W_ROWS_TOTAL = _off                 # 416 (multiple of the bf16 sublane tile)


def _layernorm(x, g, b):
    mu = jnp.mean(x, axis=-1, keepdims=True)
    var = jnp.mean(jnp.square(x - mu), axis=-1, keepdims=True)
    return (x - mu) * lax.rsqrt(var + LN_EPS) * g + b


def _mm(x, w):
    # MXU matmul: bf16 operands, f32 accumulation (weights are already bf16).
    return jnp.dot(x.astype(jnp.bfloat16), w.astype(jnp.bfloat16),
                   preferred_element_type=jnp.float32)


# ------------------------- single fused forward kernel -----------------------
def hybrid_fused_kernel(ids_ref, fslab_ref, wslab_ref, tok_ref, cls_ref,
                        *, batch, seq):
    n = batch * seq
    H = HID

    def vec(name, width=H):                       # (1, width) f32 row from the slab
        r = F_VEC_OFF[name]
        return fslab_ref[r:r + 1, 0:width]

    def wgt(name, rows, cols):                    # (rows, cols) bf16 block
        r = W_OFF[name]
        return wslab_ref[r:r + rows, 0:cols]

    # ---- embedding lookup as one-hot MXU matmul (gather stays on-chip) ------
    ids = ids_ref[...]                                        # (N, 1) int32, time-major (row = t*B + b)
    iota = lax.broadcasted_iota(jnp.int32, (n, VOCAB), 1)
    onehot = (iota == ids).astype(jnp.float32)                # (N, VOCAB)
    emb_tab = fslab_ref[F_EMB_OFF:F_EMB_OFF + VOCAB, 0:EMB]   # f32: exact row select
    emb = jnp.dot(onehot, emb_tab, preferred_element_type=jnp.float32)   # (N, EMB)

    # ---- stacked tanh RNN; input projection hoisted out of the serial loop --
    def rnn_layer(x_nm, wih, whh, b):
        xw = _mm(x_nm, wih) + b                               # whole-sequence input proj (N, H)
        outs = [jnp.tanh(xw[0:batch])]                        # t = 0, h_{-1} = 0
        for t in range(1, seq):                               # statically unrolled recurrence
            outs.append(jnp.tanh(xw[t * batch:(t + 1) * batch] + _mm(outs[-1], whh)))
        return jnp.concatenate(outs, axis=0)                  # (N, H)

    h = rnn_layer(emb, wgt("wih0", EMB, H), wgt("whh0", H, H), vec("b0"))
    h = rnn_layer(h, wgt("wih1", H, H), wgt("whh1", H, H), vec("b1"))
    # inter-layer / post-LN dropout = identity (eval mode)

    # ---- rnn_out = LayerNorm(rnn_out + x) ------------------------------------
    rnn_out = _layernorm(h + emb, vec("ln_rnn_g"), vec("ln_rnn_b"))

    # ---- prev_x = torch.roll(rnn_out, 1, dims=time); time-major => rotate rows by B
    prev = jnp.concatenate(
        [rnn_out[(seq - 1) * batch:], rnn_out[:(seq - 1) * batch]], axis=0)
    hp = rnn_out + prev                                       # Linear(h)+Linear(p) = hp@W + 2b

    # ---- packed projection: lanes [C_t | A_t | T_t @ Wcm_bot (+bias) | 0] ----
    #   C/A lanes get the PyTorch 2*bias; the third 32-lane group already holds
    #   the attention_value -> class_merging(bottom) chain folded at pack time
    #   (including bcm).  time_modulation only scales the C_t lanes.
    tmod_full = vec("tmod_pad", LANE)
    proj = (_mm(hp, wgt("wcka", H, LANE)) + vec("b_cka", LANE)) * tmod_full   # (N, 128)
    c_t = proj[:, 0:H]
    tvc = proj[:, 2 * H:3 * H]                                # == class_merging bottom-half output

    # mixed_input = LN_att(sequence_merging(cat([C_t, A_t])) + C_t)
    #   wsm is zero-padded to 128 contraction rows so it consumes `proj` directly.
    mixed_in = _mm(proj, wgt("wsm", LANE, H)) + vec("bsm")
    mixed_in = _layernorm(mixed_in + c_t, vec("ln_att_g"), vec("ln_att_b"))

    # mixed_output = LN_att(class_merging(cat([mixed_input, T_t])) + mixed_input) * tmod
    mixed_out = _mm(mixed_in, wgt("wcm_top", H, H)) + tvc
    mixed_out = _layernorm(mixed_out + mixed_in, vec("ln_att_g"), vec("ln_att_b"))
    mixed_out = mixed_out * tmod_full[:, 0:H]

    # ot = LN_out(output_weights(mixed_output) + mixed_output)
    ot = _mm(mixed_out, wgt("wo", H, H)) + vec("bo")
    ot = _layernorm(ot + mixed_out, vec("ln_out_g"), vec("ln_out_b"))

    # ---- lane-dense (128-wide) heads; wrapper slices the real columns --------
    tok_ref[...] = _mm(ot, wgt("wfc", H, LANE)) + vec("bfc", LANE)           # (N, 128)
    h_last = rnn_out[(seq - 1) * batch:]                                     # (B, H) == rnn_out[:, -1, :]
    cls_ref[...] = _mm(h_last, wgt("wcls", H, LANE)) + vec("bcls", LANE)     # (B, 128)


# ------------------------------- wrapper --------------------------------------
def hybrid_forward(packed, x_ids):
    bsz, tsz = x_ids.shape
    n = bsz * tsz
    # time-major token ids (row = t*B + b); trivial int glue on the raw input.
    ids_tm = jnp.transpose(x_ids).reshape(n, 1).astype(jnp.int32)

    kernel = functools.partial(hybrid_fused_kernel, batch=bsz, seq=tsz)
    tok_pad, cls_pad = pl.pallas_call(
        kernel,
        out_shape=(jax.ShapeDtypeStruct((n, LANE), jnp.float32),
                   jax.ShapeDtypeStruct((bsz, LANE), jnp.float32)),
        in_specs=[pl.BlockSpec(memory_space=pltpu.MemorySpace.VMEM)] * 3,
        out_specs=(pl.BlockSpec(memory_space=pltpu.MemorySpace.VMEM),
                   pl.BlockSpec(memory_space=pltpu.MemorySpace.VMEM)),
    )(ids_tm, packed["fslab"], packed["wslab"])

    # unpack lane-dense slabs (tiny output glue): (T*B,128) -> (B,T,VOCAB)
    tok = tok_pad.reshape(tsz, bsz, LANE)[:, :, :VOCAB].transpose(1, 0, 2)
    cls = cls_pad[:, :NUM_CLASSES]
    return tok, cls


# ---------------- deterministic parameter init (PyTorch-shaped) ---------------
def init_params(key):
    ks = iter(jax.random.split(key, 64))

    def w(shape, scale=0.1):
        return jax.random.normal(next(ks), shape, jnp.float32) * scale

    p = {"embedding": w((VOCAB, EMB), 0.1)}
    p["rnn_wih_t"], p["rnn_whh_t"], p["rnn_b"] = [], [], []
    for l in range(NUM_LAYERS):
        in_dim = EMB if l == 0 else HID
        p["rnn_wih_t"].append(w((in_dim, HID), 0.2))
        p["rnn_whh_t"].append(w((HID, HID), 0.2))
        p["rnn_b"].append(w((1, HID), 0.1))              # b_ih + b_hh combined

    p["wc_t"], p["bc"] = w((HID, HID)), w((1, HID), 0.05)     # attention_character
    p["wk_t"], p["bk"] = w((HID, HID)), w((1, HID), 0.05)     # attention_key
    p["wv_t"], p["bv"] = w((HID, HID)), w((1, HID), 0.05)     # attention_value
    p["tmod"] = jnp.ones((1, HID), jnp.float32)               # time_modulation
    p["wsm_t"], p["bsm"] = w((2 * HID, HID)), w((1, HID), 0.05)   # sequence_merging (2H -> H)
    p["wcm_t"], p["bcm"] = w((2 * HID, HID)), w((1, HID), 0.05)   # class_merging    (2H -> H)
    p["wo_t"], p["bo"] = w((HID, HID)), w((1, HID), 0.05)     # output_weights
    p["wfc_t"], p["bfc"] = w((HID, VOCAB)), w((1, VOCAB), 0.05)           # fc
    p["wcls_t"], p["bcls"] = w((HID, NUM_CLASSES)), w((1, NUM_CLASSES), 0.05)  # classification
    p["ln_rnn_g"], p["ln_rnn_b"] = jnp.ones((1, HID)), jnp.zeros((1, HID))
    p["ln_att_g"], p["ln_att_b"] = jnp.ones((1, HID)), jnp.zeros((1, HID))
    p["ln_out_g"], p["ln_out_b"] = jnp.ones((1, HID)), jnp.zeros((1, HID))
    return p


def pack_params(p):
    """One-time offline packing for the fused kernel.

    - All small vectors (biases, LayerNorm params, time_modulation) and the
      embedding table go into ONE f32 slab; all MXU weights go into ONE bf16
      slab -> only 3 kernel operands / DMAs total.
    - attention_character/key fused into one lane-dense projection; biases
      doubled because Linear(h)+Linear(prev) == (h+prev)@W + 2b.
    - attention_value is folded through the bottom half of class_merging
      (Wv @ Wcm_bot, bias 2*bv@Wcm_bot + bcm) and placed in the third 32-lane
      group of the packed projection.
    - sequence_merging weight zero-padded to 128 contraction rows so the kernel
      feeds it the packed 128-lane projection directly.
    - fc / classification weights zero-padded to 128 output lanes so the kernel
      writes unmasked, lane-dense output slabs.
    """
    H = HID
    wcm_t = p["wcm_t"]                               # (2H, H), transposed layout
    wcm_top, wcm_bot = wcm_t[:H], wcm_t[H:]
    wvc = p["wv_t"] @ wcm_bot                        # (H, H): value -> class_merging chain (f32)
    bvc = 2.0 * p["bv"] @ wcm_bot + p["bcm"]         # (1, H): matching bias (bcm folded in)

    def row(x):
        x = jnp.asarray(x, jnp.float32).reshape(1, -1)
        return jnp.pad(x, ((0, 0), (0, LANE - x.shape[1])))

    b_cka = jnp.concatenate([2.0 * p["bc"], 2.0 * p["bk"], bvc], axis=1)       # (1, 3H)
    tmod_pad = jnp.concatenate(
        [p["tmod"], jnp.ones((1, LANE - H), jnp.float32)], axis=1)             # only C_t lanes scaled

    f_rows = {
        "b0": row(p["rnn_b"][0]), "b1": row(p["rnn_b"][1]),
        "ln_rnn_g": row(p["ln_rnn_g"]), "ln_rnn_b": row(p["ln_rnn_b"]),
        "b_cka": row(b_cka), "tmod_pad": row(tmod_pad),
        "bsm": row(p["bsm"]),
        "ln_att_g": row(p["ln_att_g"]), "ln_att_b": row(p["ln_att_b"]),
        "bo": row(p["bo"]),
        "ln_out_g": row(p["ln_out_g"]), "ln_out_b": row(p["ln_out_b"]),
        "bfc": row(p["bfc"]), "bcls": row(p["bcls"]),
    }
    fslab = jnp.zeros((F_ROWS_TOTAL, LANE), jnp.float32)
    for name in F_ROWS:
        r = F_VEC_OFF[name]
        fslab = fslab.at[r:r + 1, :].set(f_rows[name])
    fslab = fslab.at[F_EMB_OFF:F_EMB_OFF + VOCAB, 0:EMB].set(p["embedding"])

    wcka = jnp.concatenate([p["wc_t"], p["wk_t"], wvc], axis=1)                # (H, 3H)
    wsm128 = jnp.zeros((LANE, H), jnp.float32).at[0:2 * H].set(p["wsm_t"])     # (128, H)

    blocks = {
        "wih0": p["rnn_wih_t"][0], "whh0": p["rnn_whh_t"][0],
        "wih1": p["rnn_wih_t"][1], "whh1": p["rnn_whh_t"][1],
        "wcka": wcka, "wsm": wsm128, "wcm_top": wcm_top, "wo": p["wo_t"],
        "wfc": p["wfc_t"], "wcls": p["wcls_t"],
    }
    wslab = jnp.zeros((W_ROWS_TOTAL, LANE), jnp.float32)
    for name, rows in W_BLOCKS:
        blk = jnp.asarray(blocks[name], jnp.float32)
        assert blk.shape[0] == rows, (name, blk.shape, rows)
        wslab = wslab.at[W_OFF[name]:W_OFF[name] + rows, 0:blk.shape[1]].set(blk)

    return {"fslab": fslab, "wslab": wslab.astype(jnp.bfloat16)}


if __name__ == "__main__":
    key = jax.random.PRNGKey(0)
    pk, xk = jax.random.split(key)
    params = init_params(pk)
    packed = pack_params(params)

    B, T = 2, 8
    x_ids = jax.random.randint(xk, (B, T), 0, VOCAB, dtype=jnp.int32)

    tok, cls = jax.jit(hybrid_forward)(packed, x_ids)
    jax.block_until_ready((tok, cls))

    assert tok.shape == (B, T, VOCAB) and cls.shape == (B, NUM_CLASSES)
    assert bool(jnp.isfinite(tok).all()) and bool(jnp.isfinite(cls).all())
    print("KERNEL_OK")
</pallas_src>

<mosaic_0001>
module attributes {stable_mosaic.version = 11 : i64} {
  func.func @hybrid_fused_kernel(%arg0: memref<16x1xi32, #tpu.memory_space<vmem>>, %arg1: memref<80x128xf32, #tpu.memory_space<vmem>>, %arg2: memref<416x128xbf16, #tpu.memory_space<vmem>>, %arg3: memref<16x128xf32, #tpu.memory_space<vmem>>, %arg4: memref<2x128xf32, #tpu.memory_space<vmem>>) attributes {dimension_semantics = [], scalar_prefetch = 0 : i64, scratch_operands = 0 : i64, tpu.core_type = #tpu.core_type<tc>} {
    %c0 = arith.constant 0 : index
    %c0_0 = arith.constant 0 : index
    %0 = vector.load %arg0[%c0, %c0_0] : memref<16x1xi32, #tpu.memory_space<vmem>>, vector<16x1xi32>
    %1 = tpu.iota {dimensions = array<i32: 1>} : vector<16x64xi32>
    %2 = vector.broadcast %0 : vector<16x1xi32> to vector<16x64xi32>
    %3 = arith.cmpi eq, %1, %2 : vector<16x64xi32>
    %4 = arith.extui %3 : vector<16x64xi1> to vector<16x64xi32>
    %5 = arith.sitofp %4 : vector<16x64xi32> to vector<16x64xf32>
    %c16 = arith.constant 16 : index
    %c0_1 = arith.constant 0 : index
    %6 = vector.load %arg1[%c16, %c0_1] : memref<80x128xf32, #tpu.memory_space<vmem>>, vector<64x32xf32>
    %cst = arith.constant dense<0.000000e+00> : vector<16x32xf32>
    %7 = tpu.matmul %5, %6, %cst {dimension_numbers = #tpu.dot_dimension_numbers<[1], [0], [0], [1], [0, 0, 1, 1], [], []>} : vector<16x64xf32>, vector<64x32xf32>, vector<16x32xf32> -> vector<16x32xf32>
    %c0_2 = arith.constant 0 : index
    %c0_3 = arith.constant 0 : index
    %8 = vector.load %arg2[%c0_2, %c0_3] : memref<416x128xbf16, #tpu.memory_space<vmem>>, vector<32x32xbf16>
    %c32 = arith.constant 32 : index
    %c0_4 = arith.constant 0 : index
    %9 = vector.load %arg2[%c32, %c0_4] : memref<416x128xbf16, #tpu.memory_space<vmem>>, vector<32x32xbf16>
    %c0_5 = arith.constant 0 : index
    %c0_6 = arith.constant 0 : index
    %10 = vector.load %arg1[%c0_5, %c0_6] : memref<80x128xf32, #tpu.memory_space<vmem>>, vector<1x32xf32>
    %11 = arith.truncf %7 : vector<16x32xf32> to vector<16x32xbf16>
    %cst_7 = arith.constant dense<0.000000e+00> : vector<16x32xf32>
    %12 = tpu.matmul %11, %8, %cst_7 {dimension_numbers = #tpu.dot_dimension_numbers<[1], [0], [0], [1], [0, 0, 1, 1], [], []>} : vector<16x32xbf16>, vector<32x32xbf16>, vector<16x32xf32> -> vector<16x32xf32>
    %13 = vector.broadcast %10 : vector<1x32xf32> to vector<16x32xf32>
    %14 = arith.addf %12, %13 : vector<16x32xf32>
    %15 = vector.extract_strided_slice %14 {offsets = [0, 0], sizes = [2, 32], strides = [1, 1]} : vector<16x32xf32> to vector<2x32xf32>
    %16 = math.tanh %15 : vector<2x32xf32>
    %17 = vector.extract_strided_slice %14 {offsets = [2, 0], sizes = [2, 32], strides = [1, 1]} : vector<16x32xf32> to vector<2x32xf32>
    %18 = arith.truncf %16 : vector<2x32xf32> to vector<2x32xbf16>
    %cst_8 = arith.constant dense<0.000000e+00> : vector<2x32xf32>
    %19 = tpu.matmul %18, %9, %cst_8 {dimension_numbers = #tpu.dot_dimension_numbers<[1], [0], [0], [1], [0, 0, 1, 1], [], []>} : vector<2x32xbf16>, vector<32x32xbf16>, vector<2x32xf32> -> vector<2x32xf32>
    %20 = arith.addf %17, %19 : vector<2x32xf32>
    %21 = math.tanh %20 : vector<2x32xf32>
    %22 = vector.extract_strided_slice %14 {offsets = [4, 0], sizes = [2, 32], strides = [1, 1]} : vector<16x32xf32> to vector<2x32xf32>
    %23 = arith.truncf %21 : vector<2x32xf32> to vector<2x32xbf16>
    %cst_9 = arith.constant dense<0.000000e+00> : vector<2x32xf32>
    %24 = tpu.matmul %23, %9, %cst_9 {dimension_numbers = #tpu.dot_dimension_numbers<[1], [0], [0], [1], [0, 0, 1, 1], [], []>} : vector<2x32xbf16>, vector<32x32xbf16>, vector<2x32xf32> -> vector<2x32xf32>
    %25 = arith.addf %22, %24 : vector<2x32xf32>
    %26 = math.tanh %25 : vector<2x32xf32>
    %27 = vector.extract_strided_slice %14 {offsets = [6, 0], sizes = [2, 32], strides = [1, 1]} : vector<16x32xf32> to vector<2x32xf32>
    %28 = arith.truncf %26 : vector<2x32xf32> to vector<2x32xbf16>
    %cst_10 = arith.constant dense<0.000000e+00> : vector<2x32xf32>
    %29 = tpu.matmul %28, %9, %cst_10 {dimension_numbers = #tpu.dot_dimension_numbers<[1], [0], [0], [1], [0, 0, 1, 1], [], []>} : vector<2x32xbf16>, vector<32x32xbf16>, vector<2x32xf32> -> vector<2x32xf32>
    %30 = arith.addf %27, %29 : vector<2x32xf32>
    %31 = math.tanh %30 : vector<2x32xf32>
    %32 = vector.extract_strided_slice %14 {offsets = [8, 0], sizes = [2, 32], strides = [1, 1]} : vector<16x32xf32> to vector<2x32xf32>
    %33 = arith.truncf %31 : vector<2x32xf32> to vector<2x32xbf16>
    %cst_11 = arith.constant dense<0.000000e+00> : vector<2x32xf32>
    %34 = tpu.matmul %33, %9, %cst_11 {dimension_numbers = #tpu.dot_dimension_numbers<[1], [0], [0], [1], [0, 0, 1, 1], [], []>} : vector<2x32xbf16>, vector<32x32xbf16>, vector<2x32xf32> -> vector<2x32xf32>
    %35 = arith.addf %32, %34 : vector<2x32xf32>
    %36 = math.tanh %35 : vector<2x32xf32>
    %37 = vector.extract_strided_slice %14 {offsets = [10, 0], sizes = [2, 32], strides = [1, 1]} : vector<16x32xf32> to vector<2x32xf32>
    %38 = arith.truncf %36 : vector<2x32xf32> to vector<2x32xbf16>
    %cst_12 = arith.constant dense<0.000000e+00> : vector<2x32xf32>
    %39 = tpu.matmul %38, %9, %cst_12 {dimension_numbers = #tpu.dot_dimension_numbers<[1], [0], [0], [1], [0, 0, 1, 1], [], []>} : vector<2x32xbf16>, vector<32x32xbf16>, vector<2x32xf32> -> vector<2x32xf32>
    %40 = arith.addf %37, %39 : vector<2x32xf32>
    %41 = math.tanh %40 : vector<2x32xf32>
    %42 = vector.extract_strided_slice %14 {offsets = [12, 0], sizes = [2, 32], strides = [1, 1]} : vector<16x32xf32> to vector<2x32xf32>
    %43 = arith.truncf %41 : vector<2x32xf32> to vector<2x32xbf16>
    %cst_13 = arith.constant dense<0.000000e+00> : vector<2x32xf32>
    %44 = tpu.matmul %43, %9, %cst_13 {dimension_numbers = #tpu.dot_dimension_numbers<[1], [0], [0], [1], [0, 0, 1, 1], [], []>} : vector<2x32xbf16>, vector<32x32xbf16>, vector<2x32xf32> -> vector<2x32xf32>
    %45 = arith.addf %42, %44 : vector<2x32xf32>
    %46 = math.tanh %45 : vector<2x32xf32>
    %47 = vector.extract_strided_slice %14 {offsets = [14, 0], sizes = [2, 32], strides = [1, 1]} : vector<16x32xf32> to vector<2x32xf32>
    %48 = arith.truncf %46 : vector<2x32xf32> to vector<2x32xbf16>
    %cst_14 = arith.constant dense<0.000000e+00> : vector<2x32xf32>
    %49 = tpu.matmul %48, %9, %cst_14 {dimension_numbers = #tpu.dot_dimension_numbers<[1], [0], [0], [1], [0, 0, 1, 1], [], []>} : vector<2x32xbf16>, vector<32x32xbf16>, vector<2x32xf32> -> vector<2x32xf32>
    %50 = arith.addf %47, %49 : vector<2x32xf32>
    %51 = math.tanh %50 : vector<2x32xf32>
    %52 = tpu.concatenate %16, %21, %26, %31, %36, %41, %46, %51 in 0 : vector<2x32xf32>, vector<2x32xf32>, vector<2x32xf32>, vector<2x32xf32>, vector<2x32xf32>, vector<2x32xf32>, vector<2x32xf32>, vector<2x32xf32> -> vector<16x32xf32>
    %c64 = arith.constant 64 : index
    %c0_15 = arith.constant 0 : index
    %53 = vector.load %arg2[%c64, %c0_15] : memref<416x128xbf16, #tpu.memory_space<vmem>>, vector<32x32xbf16>
    %c96 = arith.constant 96 : index
    %c0_16 = arith.constant 0 : index
    %54 = vector.load %arg2[%c96, %c0_16] : memref<416x128xbf16, #tpu.memory_space<vmem>>, vector<32x32xbf16>
    %c1 = arith.constant 1 : index
    %c0_17 = arith.constant 0 : index
    %55 = vector.load %arg1[%c1, %c0_17] : memref<80x128xf32, #tpu.memory_space<vmem>>, vector<1x32xf32>
    %56 = arith.truncf %52 : vector<16x32xf32> to vector<16x32xbf16>
    %cst_18 = arith.constant dense<0.000000e+00> : vector<16x32xf32>
    %57 = tpu.matmul %56, %53, %cst_18 {dimension_numbers = #tpu.dot_dimension_numbers<[1], [0], [0], [1], [0, 0, 1, 1], [], []>} : vector<16x32xbf16>, vector<32x32xbf16>, vector<16x32xf32> -> vector<16x32xf32>
    %58 = vector.broadcast %55 : vector<1x32xf32> to vector<16x32xf32>
    %59 = arith.addf %57, %58 : vector<16x32xf32>
    %60 = vector.extract_strided_slice %59 {offsets = [0, 0], sizes = [2, 32], strides = [1, 1]} : vector<16x32xf32> to vector<2x32xf32>
    %61 = math.tanh %60 : vector<2x32xf32>
    %62 = vector.extract_strided_slice %59 {offsets = [2, 0], sizes = [2, 32], strides = [1, 1]} : vector<16x32xf32> to vector<2x32xf32>
    %63 = arith.truncf %61 : vector<2x32xf32> to vector<2x32xbf16>
    %cst_19 = arith.constant dense<0.000000e+00> : vector<2x32xf32>
    %64 = tpu.matmul %63, %54, %cst_19 {dimension_numbers = #tpu.dot_dimension_numbers<[1], [0], [0], [1], [0, 0, 1, 1], [], []>} : vector<2x32xbf16>, vector<32x32xbf16>, vector<2x32xf32> -> vector<2x32xf32>
    %65 = arith.addf %62, %64 : vector<2x32xf32>
    %66 = math.tanh %65 : vector<2x32xf32>
    %67 = vector.extract_strided_slice %59 {offsets = [4, 0], sizes = [2, 32], strides = [1, 1]} : vector<16x32xf32> to vector<2x32xf32>
    %68 = arith.truncf %66 : vector<2x32xf32> to vector<2x32xbf16>
    %cst_20 = arith.constant dense<0.000000e+00> : vector<2x32xf32>
    %69 = tpu.matmul %68, %54, %cst_20 {dimension_numbers = #tpu.dot_dimension_numbers<[1], [0], [0], [1], [0, 0, 1, 1], [], []>} : vector<2x32xbf16>, vector<32x32xbf16>, vector<2x32xf32> -> vector<2x32xf32>
    %70 = arith.addf %67, %69 : vector<2x32xf32>
    %71 = math.tanh %70 : vector<2x32xf32>
    %72 = vector.extract_strided_slice %59 {offsets = [6, 0], sizes = [2, 32], strides = [1, 1]} : vector<16x32xf32> to vector<2x32xf32>
    %73 = arith.truncf %71 : vector<2x32xf32> to vector<2x32xbf16>
    %cst_21 = arith.constant dense<0.000000e+00> : vector<2x32xf32>
    %74 = tpu.matmul %73, %54, %cst_21 {dimension_numbers = #tpu.dot_dimension_numbers<[1], [0], [0], [1], [0, 0, 1, 1], [], []>} : vector<2x32xbf16>, vector<32x32xbf16>, vector<2x32xf32> -> vector<2x32xf32>
    %75 = arith.addf %72, %74 : vector<2x32xf32>
    %76 = math.tanh %75 : vector<2x32xf32>
    %77 = vector.extract_strided_slice %59 {offsets = [8, 0], sizes = [2, 32], strides = [1, 1]} : vector<16x32xf32> to vector<2x32xf32>
    %78 = arith.truncf %76 : vector<2x32xf32> to vector<2x32xbf16>
    %cst_22 = arith.constant dense<0.000000e+00> : vector<2x32xf32>
    %79 = tpu.matmul %78, %54, %cst_22 {dimension_numbers = #tpu.dot_dimension_numbers<[1], [0], [0], [1], [0, 0, 1, 1], [], []>} : vector<2x32xbf16>, vector<32x32xbf16>, vector<2x32xf32> -> vector<2x32xf32>
    %80 = arith.addf %77, %79 : vector<2x32xf32>
    %81 = math.tanh %80 : vector<2x32xf32>
    %82 = vector.extract_strided_slice %59 {offsets = [10, 0], sizes = [2, 32], strides = [1, 1]} : vector<16x32xf32> to vector<2x32xf32>
    %83 = arith.truncf %81 : vector<2x32xf32> to vector<2x32xbf16>
    %cst_23 = arith.constant dense<0.000000e+00> : vector<2x32xf32>
    %84 = tpu.matmul %83, %54, %cst_23 {dimension_numbers = #tpu.dot_dimension_numbers<[1], [0], [0], [1], [0, 0, 1, 1], [], []>} : vector<2x32xbf16>, vector<32x32xbf16>, vector<2x32xf32> -> vector<2x32xf32>
    %85 = arith.addf %82, %84 : vector<2x32xf32>
    %86 = math.tanh %85 : vector<2x32xf32>
    %87 = vector.extract_strided_slice %59 {offsets = [12, 0], sizes = [2, 32], strides = [1, 1]} : vector<16x32xf32> to vector<2x32xf32>
    %88 = arith.truncf %86 : vector<2x32xf32> to vector<2x32xbf16>
    %cst_24 = arith.constant dense<0.000000e+00> : vector<2x32xf32>
    %89 = tpu.matmul %88, %54, %cst_24 {dimension_numbers = #tpu.dot_dimension_numbers<[1], [0], [0], [1], [0, 0, 1, 1], [], []>} : vector<2x32xbf16>, vector<32x32xbf16>, vector<2x32xf32> -> vector<2x32xf32>
    %90 = arith.addf %87, %89 : vector<2x32xf32>
    %91 = math.tanh %90 : vector<2x32xf32>
    %92 = vector.extract_strided_slice %59 {offsets = [14, 0], sizes = [2, 32], strides = [1, 1]} : vector<16x32xf32> to vector<2x32xf32>
    %93 = arith.truncf %91 : vector<2x32xf32> to vector<2x32xbf16>
    %cst_25 = arith.constant dense<0.000000e+00> : vector<2x32xf32>
    %94 = tpu.matmul %93, %54, %cst_25 {dimension_numbers = #tpu.dot_dimension_numbers<[1], [0], [0], [1], [0, 0, 1, 1], [], []>} : vector<2x32xbf16>, vector<32x32xbf16>, vector<2x32xf32> -> vector<2x32xf32>
    %95 = arith.addf %92, %94 : vector<2x32xf32>
    %96 = math.tanh %95 : vector<2x32xf32>
    %97 = tpu.concatenate %61, %66, %71, %76, %81, %86, %91, %96 in 0 : vector<2x32xf32>, vector<2x32xf32>, vector<2x32xf32>, vector<2x32xf32>, vector<2x32xf32>, vector<2x32xf32>, vector<2x32xf32>, vector<2x32xf32> -> vector<16x32xf32>
    %98 = arith.addf %97, %7 : vector<16x32xf32>
    %c2 = arith.constant 2 : index
    %c0_26 = arith.constant 0 : index
    %99 = vector.load %arg1[%c2, %c0_26] : memref<80x128xf32, #tpu.memory_space<vmem>>, vector<1x32xf32>
    %c3 = arith.constant 3 : index
    %c0_27 = arith.constant 0 : index
    %100 = vector.load %arg1[%c3, %c0_27] : memref<80x128xf32, #tpu.memory_space<vmem>>, vector<1x32xf32>
    %cst_28 = arith.constant dense<0.000000e+00> : vector<16xf32>
    %101 = vector.multi_reduction <add>, %98, %cst_28 [1] : vector<16x32xf32> to vector<16xf32>
    %102 = vector.shape_cast %101 : vector<16xf32> to vector<16x1xf32>
    %cst_29 = arith.constant 3.200000e+01 : f32
    %103 = vector.broadcast %cst_29 : f32 to vector<16x1xf32>
    %104 = arith.divf %102, %103 : vector<16x1xf32>
    %105 = vector.broadcast %104 : vector<16x1xf32> to vector<16x32xf32>
    %106 = arith.subf %98, %105 : vector<16x32xf32>
    %107 = arith.mulf %106, %106 : vector<16x32xf32>
    %cst_30 = arith.constant dense<0.000000e+00> : vector<16xf32>
    %108 = vector.multi_reduction <add>, %107, %cst_30 [1] : vector<16x32xf32> to vector<16xf32>
    %109 = vector.shape_cast %108 : vector<16xf32> to vector<16x1xf32>
    %cst_31 = arith.constant 3.200000e+01 : f32
    %110 = vector.broadcast %cst_31 : f32 to vector<16x1xf32>
    %111 = arith.divf %109, %110 : vector<16x1xf32>
    %112 = vector.broadcast %104 : vector<16x1xf32> to vector<16x32xf32>
    %113 = arith.subf %98, %112 : vector<16x32xf32>
    %cst_32 = arith.constant 9.99999974E-6 : f32
    %114 = vector.broadcast %cst_32 : f32 to vector<16x1xf32>
    %115 = arith.addf %111, %114 : vector<16x1xf32>
    %116 = math.rsqrt %115 : vector<16x1xf32>
    %117 = vector.broadcast %116 : vector<16x1xf32> to vector<16x32xf32>
    %118 = arith.mulf %113, %117 : vector<16x32xf32>
    %119 = vector.broadcast %99 : vector<1x32xf32> to vector<16x32xf32>
    %120 = arith.mulf %118, %119 : vector<16x32xf32>
    %121 = vector.broadcast %100 : vector<1x32xf32> to vector<16x32xf32>
    %122 = arith.addf %120, %121 : vector<16x32xf32>
    %123 = vector.extract_strided_slice %122 {offsets = [14, 0], sizes = [2, 32], strides = [1, 1]} : vector<16x32xf32> to vector<2x32xf32>
    %124 = vector.extract_strided_slice %122 {offsets = [0, 0], sizes = [14, 32], strides = [1, 1]} : vector<16x32xf32> to vector<14x32xf32>
    %125 = tpu.concatenate %123, %124 in 0 : vector<2x32xf32>, vector<14x32xf32> -> vector<16x32xf32>
    %126 = arith.addf %122, %125 : vector<16x32xf32>
    %c5 = arith.constant 5 : index
    %c0_33 = arith.constant 0 : index
    %127 = vector.load %arg1[%c5, %c0_33] : memref<80x128xf32, #tpu.memory_space<vmem>>, vector<1x128xf32>
    %c128 = arith.constant 128 : index
    %c0_34 = arith.constant 0 : index
    %128 = vector.load %arg2[%c128, %c0_34] : memref<416x128xbf16, #tpu.memory_space<vmem>>, vector<32x128xbf16>
    %129 = arith.truncf %126 : vector<16x32xf32> to vector<16x32xbf16>
    %cst_35 = arith.constant dense<0.000000e+00> : vector<16x128xf32>
    %130 = tpu.matmul %129, %128, %cst_35 {dimension_numbers = #tpu.dot_dimension_numbers<[1], [0], [0], [1], [0, 0, 1, 1], [], []>} : vector<16x32xbf16>, vector<32x128xbf16>, vector<16x128xf32> -> vector<16x128xf32>
    %c4 = arith.constant 4 : index
    %c0_36 = arith.constant 0 : index
    %131 = vector.load %arg1[%c4, %c0_36] : memref<80x128xf32, #tpu.memory_space<vmem>>, vector<1x128xf32>
    %132 = vector.broadcast %131 : vector<1x128xf32> to vector<16x128xf32>
    %133 = arith.addf %130, %132 : vector<16x128xf32>
    %134 = vector.broadcast %127 : vector<1x128xf32> to vector<16x128xf32>
    %135 = arith.mulf %133, %134 : vector<16x128xf32>
    %136 = vector.extract_strided_slice %135 {offsets = [0, 0], sizes = [16, 32], strides = [1, 1]} : vector<16x128xf32> to vector<16x32xf32>
    %137 = vector.extract_strided_slice %135 {offsets = [0, 64], sizes = [16, 32], strides = [1, 1]} : vector<16x128xf32> to vector<16x32xf32>
    %c160 = arith.constant 160 : index
    %c0_37 = arith.constant 0 : index
    %138 = vector.load %arg2[%c160, %c0_37] : memref<416x128xbf16, #tpu.memory_space<vmem>>, vector<128x32xbf16>
    %139 = arith.truncf %135 : vector<16x128xf32> to vector<16x128xbf16>
    %cst_38 = arith.constant dense<0.000000e+00> : vector<16x32xf32>
    %140 = tpu.matmul %139, %138, %cst_38 {dimension_numbers = #tpu.dot_dimension_numbers<[1], [0], [0], [1], [0, 0, 1, 1], [], []>} : vector<16x128xbf16>, vector<128x32xbf16>, vector<16x32xf32> -> vector<16x32xf32>
    %c6 = arith.constant 6 : index
    %c0_39 = arith.constant 0 : index
    %141 = vector.load %arg1[%c6, %c0_39] : memref<80x128xf32, #tpu.memory_space<vmem>>, vector<1x32xf32>
    %142 = vector.broadcast %141 : vector<1x32xf32> to vector<16x32xf32>
    %143 = arith.addf %140, %142 : vector<16x32xf32>
    %144 = arith.addf %143, %136 : vector<16x32xf32>
    %c7 = arith.constant 7 : index
    %c0_40 = arith.constant 0 : index
    %145 = vector.load %arg1[%c7, %c0_40] : memref<80x128xf32, #tpu.memory_space<vmem>>, vector<1x32xf32>
    %c8 = arith.constant 8 : index
    %c0_41 = arith.constant 0 : index
    %146 = vector.load %arg1[%c8, %c0_41] : memref<80x128xf32, #tpu.memory_space<vmem>>, vector<1x32xf32>
    %cst_42 = arith.constant dense<0.000000e+00> : vector<16xf32>
    %147 = vector.multi_reduction <add>, %144, %cst_42 [1] : vector<16x32xf32> to vector<16xf32>
    %148 = vector.shape_cast %147 : vector<16xf32> to vector<16x1xf32>
    %cst_43 = arith.constant 3.200000e+01 : f32
    %149 = vector.broadcast %cst_43 : f32 to vector<16x1xf32>
    %150 = arith.divf %148, %149 : vector<16x1xf32>
    %151 = vector.broadcast %150 : vector<16x1xf32> to vector<16x32xf32>
    %152 = arith.subf %144, %151 : vector<16x32xf32>
    %153 = arith.mulf %152, %152 : vector<16x32xf32>
    %cst_44 = arith.constant dense<0.000000e+00> : vector<16xf32>
    %154 = vector.multi_reduction <add>, %153, %cst_44 [1] : vector<16x32xf32> to vector<16xf32>
    %155 = vector.shape_cast %154 : vector<16xf32> to vector<16x1xf32>
    %cst_45 = arith.constant 3.200000e+01 : f32
    %156 = vector.broadcast %cst_45 : f32 to vector<16x1xf32>
    %157 = arith.divf %155, %156 : vector<16x1xf32>
    %158 = vector.broadcast %150 : vector<16x1xf32> to vector<16x32xf32>
    %159 = arith.subf %144, %158 : vector<16x32xf32>
    %cst_46 = arith.constant 9.99999974E-6 : f32
    %160 = vector.broadcast %cst_46 : f32 to vector<16x1xf32>
    %161 = arith.addf %157, %160 : vector<16x1xf32>
    %162 = math.rsqrt %161 : vector<16x1xf32>
    %163 = vector.broadcast %162 : vector<16x1xf32> to vector<16x32xf32>
    %164 = arith.mulf %159, %163 : vector<16x32xf32>
    %165 = vector.broadcast %145 : vector<1x32xf32> to vector<16x32xf32>
    %166 = arith.mulf %164, %165 : vector<16x32xf32>
    %167 = vector.broadcast %146 : vector<1x32xf32> to vector<16x32xf32>
    %168 = arith.addf %166, %167 : vector<16x32xf32>
    %c288 = arith.constant 288 : index
    %c0_47 = arith.constant 0 : index
    %169 = vector.load %arg2[%c288, %c0_47] : memref<416x128xbf16, #tpu.memory_space<vmem>>, vector<32x32xbf16>
    %170 = arith.truncf %168 : vector<16x32xf32> to vector<16x32xbf16>
    %cst_48 = arith.constant dense<0.000000e+00> : vector<16x32xf32>
    %171 = tpu.matmul %170, %169, %cst_48 {dimension_numbers = #tpu.dot_dimension_numbers<[1], [0], [0], [1], [0, 0, 1, 1], [], []>} : vector<16x32xbf16>, vector<32x32xbf16>, vector<16x32xf32> -> vector<16x32xf32>
    %172 = arith.addf %171, %137 : vector<16x32xf32>
    %173 = arith.addf %172, %168 : vector<16x32xf32>
    %c7_49 = arith.constant 7 : index
    %c0_50 = arith.constant 0 : index
    %174 = vector.load %arg1[%c7_49, %c0_50] : memref<80x128xf32, #tpu.memory_space<vmem>>, vector<1x32xf32>
    %c8_51 = arith.constant 8 : index
    %c0_52 = arith.constant 0 : index
    %175 = vector.load %arg1[%c8_51, %c0_52] : memref<80x128xf32, #tpu.memory_space<vmem>>, vector<1x32xf32>
    %cst_53 = arith.constant dense<0.000000e+00> : vector<16xf32>
    %176 = vector.multi_reduction <add>, %173, %cst_53 [1] : vector<16x32xf32> to vector<16xf32>
    %177 = vector.shape_cast %176 : vector<16xf32> to vector<16x1xf32>
    %cst_54 = arith.constant 3.200000e+01 : f32
    %178 = vector.broadcast %cst_54 : f32 to vector<16x1xf32>
    %179 = arith.divf %177, %178 : vector<16x1xf32>
    %180 = vector.broadcast %179 : vector<16x1xf32> to vector<16x32xf32>
    %181 = arith.subf %173, %180 : vector<16x32xf32>
    %182 = arith.mulf %181, %181 : vector<16x32xf32>
    %cst_55 = arith.constant dense<0.000000e+00> : vector<16xf32>
    %183 = vector.multi_reduction <add>, %182, %cst_55 [1] : vector<16x32xf32> to vector<16xf32>
    %184 = vector.shape_cast %183 : vector<16xf32> to vector<16x1xf32>
    %cst_56 = arith.constant 3.200000e+01 : f32
    %185 = vector.broadcast %cst_56 : f32 to vector<16x1xf32>
    %186 = arith.divf %184, %185 : vector<16x1xf32>
    %187 = vector.broadcast %179 : vector<16x1xf32> to vector<16x32xf32>
    %188 = arith.subf %173, %187 : vector<16x32xf32>
    %cst_57 = arith.constant 9.99999974E-6 : f32
    %189 = vector.broadcast %cst_57 : f32 to vector<16x1xf32>
    %190 = arith.addf %186, %189 : vector<16x1xf32>
    %191 = math.rsqrt %190 : vector<16x1xf32>
    %192 = vector.broadcast %191 : vector<16x1xf32> to vector<16x32xf32>
    %193 = arith.mulf %188, %192 : vector<16x32xf32>
    %194 = vector.broadcast %174 : vector<1x32xf32> to vector<16x32xf32>
    %195 = arith.mulf %193, %194 : vector<16x32xf32>
    %196 = vector.broadcast %175 : vector<1x32xf32> to vector<16x32xf32>
    %197 = arith.addf %195, %196 : vector<16x32xf32>
    %198 = vector.extract_strided_slice %127 {offsets = [0, 0], sizes = [1, 32], strides = [1, 1]} : vector<1x128xf32> to vector<1x32xf32>
    %199 = vector.broadcast %198 : vector<1x32xf32> to vector<16x32xf32>
    %200 = arith.mulf %197, %199 : vector<16x32xf32>
    %c320 = arith.constant 320 : index
    %c0_58 = arith.constant 0 : index
    %201 = vector.load %arg2[%c320, %c0_58] : memref<416x128xbf16, #tpu.memory_space<vmem>>, vector<32x32xbf16>
    %202 = arith.truncf %200 : vector<16x32xf32> to vector<16x32xbf16>
    %cst_59 = arith.constant dense<0.000000e+00> : vector<16x32xf32>
    %203 = tpu.matmul %202, %201, %cst_59 {dimension_numbers = #tpu.dot_dimension_numbers<[1], [0], [0], [1], [0, 0, 1, 1], [], []>} : vector<16x32xbf16>, vector<32x32xbf16>, vector<16x32xf32> -> vector<16x32xf32>
    %c9 = arith.constant 9 : index
    %c0_60 = arith.constant 0 : index
    %204 = vector.load %arg1[%c9, %c0_60] : memref<80x128xf32, #tpu.memory_space<vmem>>, vector<1x32xf32>
    %205 = vector.broadcast %204 : vector<1x32xf32> to vector<16x32xf32>
    %206 = arith.addf %203, %205 : vector<16x32xf32>
    %207 = arith.addf %206, %200 : vector<16x32xf32>
    %c10 = arith.constant 10 : index
    %c0_61 = arith.constant 0 : index
    %208 = vector.load %arg1[%c10, %c0_61] : memref<80x128xf32, #tpu.memory_space<vmem>>, vector<1x32xf32>
    %c11 = arith.constant 11 : index
    %c0_62 = arith.constant 0 : index
    %209 = vector.load %arg1[%c11, %c0_62] : memref<80x128xf32, #tpu.memory_space<vmem>>, vector<1x32xf32>
    %cst_63 = arith.constant dense<0.000000e+00> : vector<16xf32>
    %210 = vector.multi_reduction <add>, %207, %cst_63 [1] : vector<16x32xf32> to vector<16xf32>
    %211 = vector.shape_cast %210 : vector<16xf32> to vector<16x1xf32>
    %cst_64 = arith.constant 3.200000e+01 : f32
    %212 = vector.broadcast %cst_64 : f32 to vector<16x1xf32>
    %213 = arith.divf %211, %212 : vector<16x1xf32>
    %214 = vector.broadcast %213 : vector<16x1xf32> to vector<16x32xf32>
    %215 = arith.subf %207, %214 : vector<16x32xf32>
    %216 = arith.mulf %215, %215 : vector<16x32xf32>
    %cst_65 = arith.constant dense<0.000000e+00> : vector<16xf32>
    %217 = vector.multi_reduction <add>, %216, %cst_65 [1] : vector<16x32xf32> to vector<16xf32>
    %218 = vector.shape_cast %217 : vector<16xf32> to vector<16x1xf32>
    %cst_66 = arith.constant 3.200000e+01 : f32
    %219 = vector.broadcast %cst_66 : f32 to vector<16x1xf32>
    %220 = arith.divf %218, %219 : vector<16x1xf32>
    %221 = vector.broadcast %213 : vector<16x1xf32> to vector<16x32xf32>
    %222 = arith.subf %207, %221 : vector<16x32xf32>
    %cst_67 = arith.constant 9.99999974E-6 : f32
    %223 = vector.broadcast %cst_67 : f32 to vector<16x1xf32>
    %224 = arith.addf %220, %223 : vector<16x1xf32>
    %225 = math.rsqrt %224 : vector<16x1xf32>
    %226 = vector.broadcast %225 : vector<16x1xf32> to vector<16x32xf32>
    %227 = arith.mulf %222, %226 : vector<16x32xf32>
    %228 = vector.broadcast %208 : vector<1x32xf32> to vector<16x32xf32>
    %229 = arith.mulf %227, %228 : vector<16x32xf32>
    %230 = vector.broadcast %209 : vector<1x32xf32> to vector<16x32xf32>
    %231 = arith.addf %229, %230 : vector<16x32xf32>
    %c352 = arith.constant 352 : index
    %c0_68 = arith.constant 0 : index
    %232 = vector.load %arg2[%c352, %c0_68] : memref<416x128xbf16, #tpu.memory_space<vmem>>, vector<32x128xbf16>
    %233 = arith.truncf %231 : vector<16x32xf32> to vector<16x32xbf16>
    %cst_69 = arith.constant dense<0.000000e+00> : vector<16x128xf32>
    %234 = tpu.matmul %233, %232, %cst_69 {dimension_numbers = #tpu.dot_dimension_numbers<[1], [0], [0], [1], [0, 0, 1, 1], [], []>} : vector<16x32xbf16>, vector<32x128xbf16>, vector<16x128xf32> -> vector<16x128xf32>
    %c12 = arith.constant 12 : index
    %c0_70 = arith.constant 0 : index
    %235 = vector.load %arg1[%c12, %c0_70] : memref<80x128xf32, #tpu.memory_space<vmem>>, vector<1x128xf32>
    %236 = vector.broadcast %235 : vector<1x128xf32> to vector<16x128xf32>
    %237 = arith.addf %234, %236 : vector<16x128xf32>
    %c0_71 = arith.constant 0 : index
    %c0_72 = arith.constant 0 : index
    %238 = vector.load %arg3[%c0_71, %c0_72] : memref<16x128xf32, #tpu.memory_space<vmem>>, vector<16x128xf32>
    tpu.vector_store %arg3[%c0_71, %c0_72], %237 {strides = array<i32>} : memref<16x128xf32, #tpu.memory_space<vmem>>, vector<16x128xf32>,
    %239 = vector.extract_strided_slice %122 {offsets = [14, 0], sizes = [2, 32], strides = [1, 1]} : vector<16x32xf32> to vector<2x32xf32>
    %c384 = arith.constant 384 : index
    %c0_73 = arith.constant 0 : index
    %240 = vector.load %arg2[%c384, %c0_73] : memref<416x128xbf16, #tpu.memory_space<vmem>>, vector<32x128xbf16>
    %241 = arith.truncf %239 : vector<2x32xf32> to vector<2x32xbf16>
    %cst_74 = arith.constant dense<0.000000e+00> : vector<2x128xf32>
    %242 = tpu.matmul %241, %240, %cst_74 {dimension_numbers = #tpu.dot_dimension_numbers<[1], [0], [0], [1], [0, 0, 1, 1], [], []>} : vector<2x32xbf16>, vector<32x128xbf16>, vector<2x128xf32> -> vector<2x128xf32>
    %c13 = arith.constant 13 : index
    %c0_75 = arith.constant 0 : index
    %243 = vector.load %arg1[%c13, %c0_75] : memref<80x128xf32, #tpu.memory_space<vmem>>, vector<1x128xf32>
    %244 = vector.broadcast %243 : vector<1x128xf32> to vector<2x128xf32>
    %245 = arith.addf %242, %244 : vector<2x128xf32>
    %c0_76 = arith.constant 0 : index
    %c0_77 = arith.constant 0 : index
    %246 = vector.load %arg4[%c0_76, %c0_77] : memref<2x128xf32, #tpu.memory_space<vmem>>, vector<2x128xf32>
    tpu.vector_store %arg4[%c0_76, %c0_77], %245 {strides = array<i32>} : memref<2x128xf32, #tpu.memory_space<vmem>>, vector<2x128xf32>,
    return
  }
}

</mosaic_0001>

<llo_original>
// kernel: hybrid_forward.1
$region0: #{hybrid_forward.1}
  #allocation0 [shape = 'u32[]', space=smem, size = 0x4, offset = 0x4, fixed_abs, tag = 'smem constant byte address 0x4 - core index']
  #allocation1 [shape = 'u32[72,128]{1,0:T(1,128)}', space=vmem, size = 0x9000, scoped, tag = 'internal scratch']
  %s0 = inlined_call_operand.vmem [shape: s32[16,1], index: 0, kind: input, shape index: {}]
  %s1 = inlined_call_operand.hbm [shape: f32[80,128], index: 1, kind: input, shape index: {}]
  %s2 = inlined_call_operand.hbm [shape: bf16[416,128], index: 2, kind: input, shape index: {}]
  %s3 = inlined_call_operand.vmem [shape: f32[16,128], index: 3, kind: output, shape index: {0}]
  %s4 = inlined_call_operand.hbm [shape: f32[2,128], index: 4, kind: output, shape index: {1}]
  %5 = xla_tuple %s3, %s4
  %s6 = sld [smem:[#allocation0]]
  $region38: #{hybrid_forward.1} parent=0
    _
  %s8 = ssub.s32 1, %s6
  %s9 = scalar_select 0, %s8, %s6
  $region1: #{hybrid_forward.1} parent=0
    #allocation2 [shape = 'u8[40960]{0}', space=vmem, size = 0xa000, scoped, tag = 'input window, operand 1, single buffered']
    #allocation3 [shape = 's32[1]{0}', space=sflag, size = 0x4, scoped, tag = 'scoped memory for hybrid_forward.1']
    #allocation4 [shape = 's32[1]{0}', space=sflag, size = 0x4, scoped, tag = 'scoped memory for hybrid_forward.1']
    #allocation5 [shape = 'u8[106496]{0}', space=vmem, size = 0x1a000, scoped, tag = 'input window, operand 2, single buffered']
    #allocation6 [shape = 's32[1]{0}', space=sflag, size = 0x4, scoped, tag = 'scoped memory for hybrid_forward.1']
    #allocation7 [shape = 'u8[1024]{0}', space=vmem, size = 0x400, scoped, tag = 'output window, operand 1, single buffered']
    %10 = vsyncpa [#allocation3], 0
    %11 = vsyncpa [#allocation6], 0
    %12 = vsyncpa [#allocation4], 0
    // Predicated region
    $region2: #{hybrid_forward.1} parent=1 // pred_check
      _
    $region3: #{hybrid_forward.1} parent=1 // pred_check_branch
      %14 = sbr.rel (0) target = $region5
    $region4: #{hybrid_forward.1} parent=1 // pred_region
      _
    $region5: #{hybrid_forward.1} parent=1 // pred_fallthru
      _
    // Predicated region
    $region6: #{hybrid_forward.1} parent=1 // pred_check
      _
    $region7: #{hybrid_forward.1} parent=1 // pred_check_branch
      %16 = sbr.rel (0) target = $region9
    $region8: #{hybrid_forward.1} parent=1 // pred_region
      %18 = vsyncadd [#allocation3], 0
      %s19 = sshll.u32 %s1, 4
      %s20 = int_to_ptr.hbm [resolvable:$true] %s19
      %s21 = sshll.u32 [#allocation2], 4
      %s22 = int_to_ptr.vmem [resolvable:$true] %s21
      %27 = dma.hbm_to_vmem [thread:$0]  %s20, 1280, %s22, [#allocation3], 128, 128, 8
    $region9: #{hybrid_forward.1} parent=1 // pred_fallthru
      _
    // Predicated region
    $region10: #{hybrid_forward.1} parent=1 // pred_check
      _
    $region11: #{hybrid_forward.1} parent=1 // pred_check_branch
      %29 = sbr.rel (0) target = $region13
    $region12: #{hybrid_forward.1} parent=1 // pred_region
      %31 = vsyncadd [#allocation6], 0
      %s32 = sshll.u32 %s2, 4
      %s33 = int_to_ptr.hbm [resolvable:$true] %s32
      %s34 = sshll.u32 [#allocation5], 4
      %s35 = int_to_ptr.vmem [resolvable:$true] %s34
      %40 = dma.hbm_to_vmem [thread:$0]  %s33, 3328, %s35, [#allocation6], 64, 64, 4
    $region13: #{hybrid_forward.1} parent=1 // pred_fallthru
      _
    // Predicated region
    $region14: #{hybrid_forward.1} parent=1 // pred_check
      _
    $region15: #{hybrid_forward.1} parent=1 // pred_check_branch
      %42 = sbr.rel (0) target = $region17
    $region16: #{hybrid_forward.1} parent=1 // pred_region
      %44 = dma.done [#allocation3], 1280
    $region17: #{hybrid_forward.1} parent=1 // pred_fallthru
      _
    // Predicated region
    $region18: #{hybrid_forward.1} parent=1 // pred_check
      _
    $region19: #{hybrid_forward.1} parent=1 // pred_check_branch
      %46 = sbr.rel (0) target = $region21
    $region20: #{hybrid_forward.1} parent=1 // pred_region
      %48 = dma.done [#allocation6], 3328
    $region21: #{hybrid_forward.1} parent=1 // pred_fallthru
      _
    %v50 = vld [vmem:[%s0] sm:$0xff]
    %v51 = vld [vmem:[%s0 + $0x8] sm:$0xff]
    %v52 = vlaneseq
    %v53 = vand.u32 %v52, 127
    %54 = vset.pattern.permute.xlu0 0
    %55 = vperm.xlu0 %54, %v50
    %v56 = vpop.permute.xlu0 %55
    %57 = vset.pattern.permute.xlu0 0
    %58 = vperm.xlu0 %57, %v51
    %v59 = vpop.permute.xlu0 %58
    %vm60 = vcmp.eq.s32.totalorder %v53, %v56
    %vm61 = vcmp.eq.s32.totalorder %v53, %v59
    %v62 = vsel %vm60, 1, 0
    %v63 = vsel %vm61, 1, 0
    %v64 = vcvt.s32.f32 %v62
    %v65 = vcvt.s32.f32 %v63
    %v66 = vld [vmem:[#allocation2 + $0x10] sm:$0xff]
    %v67 = vld [vmem:[#allocation2 + $0x18] sm:$0xff]
    %v68 = vld [vmem:[#allocation2 + $0x20] sm:$0xff]
    %v69 = vld [vmem:[#allocation2 + $0x28] sm:$0xff]
    %v70 = vld [vmem:[#allocation2 + $0x30] sm:$0xff]
    %v71 = vld [vmem:[#allocation2 + $0x38] sm:$0xff]
    %v72 = vld [vmem:[#allocation2 + $0x40] sm:$0xff]
    %v73 = vld [vmem:[#allocation2 + $0x48] sm:$0xff]
    %vm74 = vcmask 523264
    %v76 = vsel %vm74, %v64, 0
    %v79 = vsel %vm74, %v65, 0
    %81 = vmatpush.msra.mxu0 0.0
    %82 = vmatpush.msra.mxu0 0.0
    %83 = vmatpush.msra.mxu0 0.0
    %84 = vmatpush.msra.mxu0 0.0
    %85 = vmatpush.msra.mxu0 0.0
    %86 = vmatpush.msra.mxu0 0.0
    %87 = vmatpush.msra.mxu0 0.0
    %88 = vmatpush.msra.mxu0 0.0
    %89 = vmatpush.msra.mxu0 %v73
    %90 = vmatpush.msra.mxu0 %v72
    %91 = vmatpush.msra.mxu0 %v71
    %92 = vmatpush.msra.mxu0 %v70
    %93 = vmatpush.msra.mxu0 %v69
    %94 = vmatpush.msra.mxu0 %v68
    %95 = vmatpush.msra.mxu0 %v67
    %96 = vmatpush.msra.mxu0 %v66
    %97 = vmatmul.f32.gmra.mxu0 %v76
    %v98 = vpop.f32.mrf.mxu0
    %v99 = vadd.f32 0.0, %v98
    %100 = vmatmul.f32.gmra.mxu0 %v79
    %v101 = vpop.f32.mrf.mxu0
    %v102 = vadd.f32 0.0, %v101
    %103 = vdwg.mxu0
    %v104 = vld [vmem:[#allocation5] sm:$0xf]
    %v105 = vld [vmem:[#allocation5 + $0x4] sm:$0xf]
    %v106 = vld [vmem:[#allocation5 + $0x8] sm:$0xf]
    %v107 = vld [vmem:[#allocation5 + $0xc] sm:$0xf]
    %v108 = vld [vmem:[#allocation5 + $0x10] sm:$0xf]
    %v109 = vld [vmem:[#allocation5 + $0x14] sm:$0xf]
    %v110 = vld [vmem:[#allocation5 + $0x18] sm:$0xf]
    %v111 = vld [vmem:[#allocation5 + $0x1c] sm:$0xf]
    %v112 = vld [vmem:[#allocation2] sm:$0x1]
    %v113 = vpack.c.bf16 %v102, %v99
    %v114 = vperm.slane %v112, 0
    %v119 = vunpack.c.l.b16 %v104
    %v120 = vunpack.c.l.b16 %v105
    %v121 = vunpack.c.l.b16 %v106
    %v122 = vunpack.c.l.b16 %v107
    %v123 = vpack.c.b16 %v120, %v119
    %v124 = vpack.c.b16 %v122, %v121
    %vm127 = vcmask 261120
    %v129 = vsel %vm127, %v113, 0
    %131 = vmatpush.bf16.msra.mxu0 0
    %132 = vmatpush.bf16.msra.mxu0 0
    %133 = vmatpush.bf16.msra.mxu0 0
    %134 = vmatpush.bf16.msra.mxu0 0
    %135 = vmatpush.bf16.msra.mxu0 0
    %136 = vmatpush.bf16.msra.mxu0 0
    %137 = vmatpush.bf16.msra.mxu0 %v124
    %138 = vmatpush.bf16.msra.mxu0 %v123
    %139 = vmatmul.bf16.gmra.mxu0 %v129
    %v140 = vpop.f32.mrf.mxu0
    %v141 = vadd.f32 %v114, %v140
    %v142 = vpop.f32.mrf.mxu0
    %v143 = vadd.f32 %v114, %v142
    %144 = vdwg.mxu0
    %v145 = vtanh.pop %v141
    %v146 = vpack.c.bf16 %v145, %v145
    %v151 = vunpack.c.l.b16 %v108
    %v152 = vunpack.c.l.b16 %v109
    %v153 = vunpack.c.l.b16 %v110
    %v154 = vunpack.c.l.b16 %v111
    %v155 = vpack.c.b16 %v152, %v151
    %v156 = vpack.c.b16 %v154, %v153
    %v160 = vsel %vm127, %v146, 0
    %162 = vmatpush.bf16.msra.mxu0 0
    %163 = vmatpush.bf16.msra.mxu0 0
    %164 = vmatpush.bf16.msra.mxu0 0
    %165 = vmatpush.bf16.msra.mxu0 0
    %166 = vmatpush.bf16.msra.mxu0 0
    %167 = vmatpush.bf16.msra.mxu0 0
    %168 = vmatpush.bf16.msra.mxu0 %v156
    %169 = vmatpush.bf16.msra.mxu0 %v155
    %170 = vmatmul.bf16.gmra.mxu0 %v160
    %v171 = vpop.f32.mrf.mxu0
    %v172 = vadd.f32 0.0, %v171
    %v173 = vpop.f32.mrf.mxu0
    %174 = vdwg.mxu0
    %v176 = vrot.slane %v172, 6
    %v178 = vadd.f32 %v141, %v176
    %v179 = vtanh.pop %v178
    %v180 = vpack.c.bf16 %v179, %v179
    %v182 = vrot.slane %v180, 1
    %v184 = vsel %vm127, %v182, 0
    %186 = vmatpush.bf16.msra.mxu0 0
    %187 = vmatpush.bf16.msra.mxu0 0
    %188 = vmatpush.bf16.msra.mxu0 0
    %189 = vmatpush.bf16.msra.mxu0 0
    %190 = vmatpush.bf16.msra.mxu0 0
    %191 = vmatpush.bf16.msra.mxu0 0
    %192 = vmatpush.bf16.msra.mxu0 %v156
    %193 = vmatpush.bf16.msra.mxu0 %v155
    %194 = vmatmul.bf16.gmra.mxu0 %v184
    %v195 = vpop.f32.mrf.mxu0
    %v196 = vadd.f32 0.0, %v195
    %v197 = vpop.f32.mrf.mxu0
    %198 = vdwg.mxu0
    %v200 = vrot.slane %v196, 4
    %v202 = vadd.f32 %v141, %v200
    %v203 = vtanh.pop %v202
    %v204 = vpack.c.bf16 %v203, %v203
    %v206 = vrot.slane %v204, 2
    %v208 = vsel %vm127, %v206, 0
    %210 = vmatpush.bf16.msra.mxu0 0
    %211 = vmatpush.bf16.msra.mxu0 0
    %212 = vmatpush.bf16.msra.mxu0 0
    %213 = vmatpush.bf16.msra.mxu0 0
    %214 = vmatpush.bf16.msra.mxu0 0
    %215 = vmatpush.bf16.msra.mxu0 0
    %216 = vmatpush.bf16.msra.mxu0 %v156
    %217 = vmatpush.bf16.msra.mxu0 %v155
    %218 = vmatmul.bf16.gmra.mxu0 %v208
    %v219 = vpop.f32.mrf.mxu0
    %v220 = vadd.f32 0.0, %v219
    %v221 = vpop.f32.mrf.mxu0
    %222 = vdwg.mxu0
    %v224 = vrot.slane %v220, 2
    %v226 = vadd.f32 %v141, %v224
    %v227 = vtanh.pop %v226
    %v228 = vpack.c.bf16 %v227, %v227
    %v230 = vrot.slane %v228, 3
    %v232 = vsel %vm127, %v230, 0
    %234 = vmatpush.bf16.msra.mxu0 0
    %235 = vmatpush.bf16.msra.mxu0 0
    %236 = vmatpush.bf16.msra.mxu0 0
    %237 = vmatpush.bf16.msra.mxu0 0
    %238 = vmatpush.bf16.msra.mxu0 0
    %239 = vmatpush.bf16.msra.mxu0 0
    %240 = vmatpush.bf16.msra.mxu0 %v156
    %241 = vmatpush.bf16.msra.mxu0 %v155
    %242 = vmatmul.bf16.gmra.mxu0 %v232
    %v243 = vpop.f32.mrf.mxu0
    %v244 = vadd.f32 0.0, %v243
    %v245 = vpop.f32.mrf.mxu0
    %246 = vdwg.mxu0
    %v247 = vadd.f32 %v143, %v244
    %v248 = vtanh.pop %v247
    %v249 = vpack.c.bf16 %v248, %v248
    %v251 = vsel %vm127, %v249, 0
    %253 = vmatpush.bf16.msra.mxu0 0
    %254 = vmatpush.bf16.msra.mxu0 0
    %255 = vmatpush.bf16.msra.mxu0 0
    %256 = vmatpush.bf16.msra.mxu0 0
    %257 = vmatpush.bf16.msra.mxu0 0
    %258 = vmatpush.bf16.msra.mxu0 0
    %259 = vmatpush.bf16.msra.mxu0 %v156
    %260 = vmatpush.bf16.msra.mxu0 %v155
    %261 = vmatmul.bf16.gmra.mxu0 %v251
    %v262 = vpop.f32.mrf.mxu0
    %v263 = vadd.f32 0.0, %v262
    %v264 = vpop.f32.mrf.mxu0
    %265 = vdwg.mxu0
    %v267 = vrot.slane %v263, 6
    %v269 = vadd.f32 %v143, %v267
    %v270 = vtanh.pop %v269
    %v271 = vpack.c.bf16 %v270, %v270
    %v273 = vrot.slane %v271, 1
    %v275 = vsel %vm127, %v273, 0
    %277 = vmatpush.bf16.msra.mxu0 0
    %278 = vmatpush.bf16.msra.mxu0 0
    %279 = vmatpush.bf16.msra.mxu0 0
    %280 = vmatpush.bf16.msra.mxu0 0
    %281 = vmatpush.bf16.msra.mxu0 0
    %282 = vmatpush.bf16.msra.mxu0 0
    %283 = vmatpush.bf16.msra.mxu0 %v156
    %284 = vmatpush.bf16.msra.mxu0 %v155
    %285 = vmatmul.bf16.gmra.mxu0 %v275
    %v286 = vpop.f32.mrf.mxu0
    %v287 = vadd.f32 0.0, %v286
    %v288 = vpop.f32.mrf.mxu0
    %289 = vdwg.mxu0
    %v291 = vrot.slane %v287, 4
    %v293 = vadd.f32 %v143, %v291
    %v294 = vtanh.pop %v293
    %v295 = vpack.c.bf16 %v294, %v294
    %v297 = vrot.slane %v295, 2
    %v299 = vsel %vm127, %v297, 0
    %301 = vmatpush.bf16.msra.mxu0 0
    %302 = vmatpush.bf16.msra.mxu0 0
    %303 = vmatpush.bf16.msra.mxu0 0
    %304 = vmatpush.bf16.msra.mxu0 0
    %305 = vmatpush.bf16.msra.mxu0 0
    %306 = vmatpush.bf16.msra.mxu0 0
    %307 = vmatpush.bf16.msra.mxu0 %v156
    %308 = vmatpush.bf16.msra.mxu0 %v155
    %309 = vmatmul.bf16.gmra.mxu0 %v299
    %v310 = vpop.f32.mrf.mxu0
    %v311 = vadd.f32 0.0, %v310
    %v312 = vpop.f32.mrf.mxu0
    %313 = vdwg.mxu0
    %v315 = vrot.slane %v311, 2
    %v317 = vadd.f32 %v143, %v315
    %v318 = vtanh.pop %v317
    %vm319 = vcmask 1041408
    %v320 = vsel %vm319, %v145, %v179
    %vm321 = vcmask 1043456
    %v322 = vsel %vm321, %v320, %v203
    %vm323 = vcmask 1045504
    %v324 = vsel %vm323, %v322, %v227
    %v325 = vsel %vm319, %v248, %v270
    %v326 = vsel %vm321, %v325, %v294
    %v327 = vsel %vm323, %v326, %v318
    %v328 = vld [vmem:[#allocation5 + $0x20] sm:$0xf]
    %v329 = vld [vmem:[#allocation5 + $0x24] sm:$0xf]
    %v330 = vld [vmem:[#allocation5 + $0x28] sm:$0xf]
    %v331 = vld [vmem:[#allocation5 + $0x2c] sm:$0xf]
    %v332 = vld [vmem:[#allocation5 + $0x30] sm:$0xf]
    %v333 = vld [vmem:[#allocation5 + $0x34] sm:$0xf]
    %v334 = vld [vmem:[#allocation5 + $0x38] sm:$0xf]
    %v335 = vld [vmem:[#allocation5 + $0x3c] sm:$0xf]
    %v336 = vld [vmem:[#allocation2 + $0x1] sm:$0x1]
    %v337 = vpack.c.bf16 %v327, %v324
    %v338 = vperm.slane %v336, 0
    %v343 = vunpack.c.l.b16 %v328
    %v344 = vunpack.c.l.b16 %v329
    %v345 = vunpack.c.l.b16 %v330
    %v346 = vunpack.c.l.b16 %v331
    %v347 = vpack.c.b16 %v344, %v343
    %v348 = vpack.c.b16 %v346, %v345
    %v352 = vsel %vm127, %v337, 0
    %354 = vmatpush.bf16.msra.mxu0 0
    %355 = vmatpush.bf16.msra.mxu0 0
    %356 = vmatpush.bf16.msra.mxu0 0
    %357 = vmatpush.bf16.msra.mxu0 0
    %358 = vmatpush.bf16.msra.mxu0 0
    %359 = vmatpush.bf16.msra.mxu0 0
    %360 = vmatpush.bf16.msra.mxu0 %v348
    %361 = vmatpush.bf16.msra.mxu0 %v347
    %362 = vmatmul.bf16.gmra.mxu0 %v352
    %v363 = vpop.f32.mrf.mxu0
    %v364 = vadd.f32 %v338, %v363
    %v365 = vpop.f32.mrf.mxu0
    %v366 = vadd.f32 %v338, %v365
    %367 = vdwg.mxu0
    %v368 = vtanh.pop %v364
    %v369 = vpack.c.bf16 %v368, %v368
    %v374 = vunpack.c.l.b16 %v332
    %v375 = vunpack.c.l.b16 %v333
    %v376 = vunpack.c.l.b16 %v334
    %v377 = vunpack.c.l.b16 %v335
    %v378 = vpack.c.b16 %v375, %v374
    %v379 = vpack.c.b16 %v377, %v376
    %v383 = vsel %vm127, %v369, 0
    %385 = vmatpush.bf16.msra.mxu0 0
    %386 = vmatpush.bf16.msra.mxu0 0
    %387 = vmatpush.bf16.msra.mxu0 0
    %388 = vmatpush.bf16.msra.mxu0 0
    %389 = vmatpush.bf16.msra.mxu0 0
    %390 = vmatpush.bf16.msra.mxu0 0
    %391 = vmatpush.bf16.msra.mxu0 %v379
    %392 = vmatpush.bf16.msra.mxu0 %v378
    %393 = vmatmul.bf16.gmra.mxu0 %v383
    %v394 = vpop.f32.mrf.mxu0
    %v395 = vadd.f32 0.0, %v394
    %v396 = vpop.f32.mrf.mxu0
    %397 = vdwg.mxu0
    %v399 = vrot.slane %v395, 6
    %v401 = vadd.f32 %v364, %v399
    %v402 = vtanh.pop %v401
    %v403 = vpack.c.bf16 %v402, %v402
    %v405 = vrot.slane %v403, 1
    %v407 = vsel %vm127, %v405, 0
    %409 = vmatpush.bf16.msra.mxu0 0
    %410 = vmatpush.bf16.msra.mxu0 0
    %411 = vmatpush.bf16.msra.mxu0 0
    %412 = vmatpush.bf16.msra.mxu0 0
    %413 = vmatpush.bf16.msra.mxu0 0
    %414 = vmatpush.bf16.msra.mxu0 0
    %415 = vmatpush.bf16.msra.mxu0 %v379
    %416 = vmatpush.bf16.msra.mxu0 %v378
    %417 = vmatmul.bf16.gmra.mxu0 %v407
    %v418 = vpop.f32.mrf.mxu0
    %v419 = vadd.f32 0.0, %v418
    %v420 = vpop.f32.mrf.mxu0
    %421 = vdwg.mxu0
    %v423 = vrot.slane %v419, 4
    %v425 = vadd.f32 %v364, %v423
    %v426 = vtanh.pop %v425
    %v427 = vpack.c.bf16 %v426, %v426
    %v429 = vrot.slane %v427, 2
    %v431 = vsel %vm127, %v429, 0
    %433 = vmatpush.bf16.msra.mxu0 0
    %434 = vmatpush.bf16.msra.mxu0 0
    %435 = vmatpush.bf16.msra.mxu0 0
    %436 = vmatpush.bf16.msra.mxu0 0
    %437 = vmatpush.bf16.msra.mxu0 0
    %438 = vmatpush.bf16.msra.mxu0 0
    %439 = vmatpush.bf16.msra.mxu0 %v379
    %440 = vmatpush.bf16.msra.mxu0 %v378
    %441 = vmatmul.bf16.gmra.mxu0 %v431
    %v442 = vpop.f32.mrf.mxu0
    %v443 = vadd.f32 0.0, %v442
    %v444 = vpop.f32.mrf.mxu0
    %445 = vdwg.mxu0
    %v447 = vrot.slane %v443, 2
    %v449 = vadd.f32 %v364, %v447
    %v450 = vtanh.pop %v449
    %v451 = vpack.c.bf16 %v450, %v450
    %v453 = vrot.slane %v451, 3
    %v455 = vsel %vm127, %v453, 0
    %457 = vmatpush.bf16.msra.mxu0 0
    %458 = vmatpush.bf16.msra.mxu0 0
    %459 = vmatpush.bf16.msra.mxu0 0
    %460 = vmatpush.bf16.msra.mxu0 0
    %461 = vmatpush.bf16.msra.mxu0 0
    %462 = vmatpush.bf16.msra.mxu0 0
    %463 = vmatpush.bf16.msra.mxu0 %v379
    %464 = vmatpush.bf16.msra.mxu0 %v378
    %465 = vmatmul.bf16.gmra.mxu0 %v455
    %v466 = vpop.f32.mrf.mxu0
    %v467 = vadd.f32 0.0, %v466
    %v468 = vpop.f32.mrf.mxu0
    %469 = vdwg.mxu0
    %v470 = vadd.f32 %v366, %v467
    %v471 = vtanh.pop %v470
    %v472 = vpack.c.bf16 %v471, %v471
    %v474 = vsel %vm127, %v472, 0
    %476 = vmatpush.bf16.msra.mxu0 0
    %477 = vmatpush.bf16.msra.mxu0 0
    %478 = vmatpush.bf16.msra.mxu0 0
    %479 = vmatpush.bf16.msra.mxu0 0
    %480 = vmatpush.bf16.msra.mxu0 0
    %481 = vmatpush.bf16.msra.mxu0 0
    %482 = vmatpush.bf16.msra.mxu0 %v379
    %483 = vmatpush.bf16.msra.mxu0 %v378
    %484 = vmatmul.bf16.gmra.mxu0 %v474
    %v485 = vpop.f32.mrf.mxu0
    %v486 = vadd.f32 0.0, %v485
    %v487 = vpop.f32.mrf.mxu0
    %488 = vdwg.mxu0
    %v490 = vrot.slane %v486, 6
    %v492 = vadd.f32 %v366, %v490
    %v493 = vtanh.pop %v492
    %v494 = vpack.c.bf16 %v493, %v493
    %v496 = vrot.slane %v494, 1
    %v498 = vsel %vm127, %v496, 0
    %500 = vmatpush.bf16.msra.mxu0 0
    %501 = vmatpush.bf16.msra.mxu0 0
    %502 = vmatpush.bf16.msra.mxu0 0
    %503 = vmatpush.bf16.msra.mxu0 0
    %504 = vmatpush.bf16.msra.mxu0 0
    %505 = vmatpush.bf16.msra.mxu0 0
    %506 = vmatpush.bf16.msra.mxu0 %v379
    %507 = vmatpush.bf16.msra.mxu0 %v378
    %508 = vmatmul.bf16.gmra.mxu0 %v498
    %v509 = vpop.f32.mrf.mxu0
    %v510 = vadd.f32 0.0, %v509
    %v511 = vpop.f32.mrf.mxu0
    %512 = vdwg.mxu0
    %v514 = vrot.slane %v510, 4
    %v516 = vadd.f32 %v366, %v514
    %v517 = vtanh.pop %v516
    %v518 = vpack.c.bf16 %v517, %v517
    %v520 = vrot.slane %v518, 2
    %v522 = vsel %vm127, %v520, 0
    %524 = vmatpush.bf16.msra.mxu0 0
    %525 = vmatpush.bf16.msra.mxu0 0
    %526 = vmatpush.bf16.msra.mxu0 0
    %527 = vmatpush.bf16.msra.mxu0 0
    %528 = vmatpush.bf16.msra.mxu0 0
    %529 = vmatpush.bf16.msra.mxu0 0
    %530 = vmatpush.bf16.msra.mxu0 %v379
    %531 = vmatpush.bf16.msra.mxu0 %v378
    %532 = vmatmul.bf16.gmra.mxu0 %v522
    %v533 = vpop.f32.mrf.mxu0
    %v534 = vadd.f32 0.0, %v533
    %v535 = vpop.f32.mrf.mxu0
    %536 = vdwg.mxu0
    %v538 = vrot.slane %v534, 2
    %v540 = vadd.f32 %v366, %v538
    %v541 = vtanh.pop %v540
    %v542 = vsel %vm319, %v368, %v402
    %v543 = vsel %vm321, %v542, %v426
    %v544 = vsel %vm323, %v543, %v450
    %v545 = vsel %vm319, %v471, %v493
    %v546 = vsel %vm321, %v545, %v517
    %v547 = vsel %vm323, %v546, %v541
    %v548 = vadd.f32 %v544, %v99
    %v549 = vadd.f32 %v547, %v102
    %v550 = vld [vmem:[#allocation2 + $0x2] sm:$0x1]
    %v551 = vld [vmem:[#allocation2 + $0x3] sm:$0x1]
    %v552 = vsel %vm127, %v548, 0.0
    %553 = vadd.xlane.f32.xlu0 %v552
    %v554 = vpop.xlane.xlu0 %553
    %v555 = vsel %vm127, %v549, 0.0
    %556 = vadd.xlane.f32.xlu0 %v555
    %v557 = vpop.xlane.xlu0 %556
    %v558 = vrcp.pop 32.0
    %v559 = vmul.f32 32.0, %v558
    %v560 = vsub.f32 1.0, %v559
    %v561 = vmul.f32 %v558, %v560
    %v562 = vadd.f32 %v558, %v561
    %vm563 = vweird.f32 %v558
    %v564 = vsel %vm563, %v558, %v562
    %v565 = vmul.f32 %v554, %v564
    %v566 = vmul.f32 %v557, %v564
    %v567 = vsub.f32 %v548, %v565
    %v568 = vsub.f32 %v549, %v566
    %v569 = vmul.f32 %v567, %v567
    %v570 = vmul.f32 %v568, %v568
    %v571 = vsel %vm127, %v569, 0.0
    %572 = vadd.xlane.f32.xlu0 %v571
    %v573 = vpop.xlane.xlu0 %572
    %v574 = vsel %vm127, %v570, 0.0
    %575 = vadd.xlane.f32.xlu0 %v574
    %v576 = vpop.xlane.xlu0 %575
    %v577 = vmul.f32 %v573, %v564
    %v578 = vmul.f32 %v576, %v564
    %v579 = vadd.f32 %v577, 1e-05
    %v580 = vadd.f32 %v578, 1e-05
    %v581 = vrsqrt.pop %v579
    %v582 = vmul.f32 %v581, %v579
    %v583 = vmul.f32 %v582, %v581
    %v584 = vmul.f32 0.5, %v583
    %v585 = vsub.f32 1.5, %v584
    %v586 = vmul.f32 %v581, %v585
    %vm587 = vweird.f32 %v579
    %vm588 = vweird.f32 %v581
    %vm589 = vmor %vm587, %vm588
    %v590 = vsel %vm589, %v581, %v586
    %v591 = vrsqrt.pop %v580
    %v592 = vmul.f32 %v591, %v580
    %v593 = vmul.f32 %v592, %v591
    %v594 = vmul.f32 0.5, %v593
    %v595 = vsub.f32 1.5, %v594
    %v596 = vmul.f32 %v591, %v595
    %vm597 = vweird.f32 %v580
    %vm598 = vweird.f32 %v591
    %vm599 = vmor %vm597, %vm598
    %v600 = vsel %vm599, %v591, %v596
    %v601 = vmul.f32 %v567, %v590
    %v602 = vmul.f32 %v568, %v600
    %v603 = vperm.slane %v550, 0
    %v604 = vmul.f32 %v601, %v603
    %v605 = vmul.f32 %v602, %v603
    %v606 = vperm.slane %v551, 0
    %v607 = vadd.f32 %v604, %v606
    %v608 = vadd.f32 %v605, %v606
    %v610 = vrot.slane %v608, 6
    %v613 = vrot.slane %v607, 6
    %v614 = vsel %vm319, %v613, %v610
    %v617 = vsel %vm319, %v610, %v613
    %v618 = vadd.f32 %v607, %v617
    %v619 = vadd.f32 %v608, %v614
    %v620 = vld [vmem:[#allocation2 + $0x5] sm:$0x1]
    %v621 = vld [vmem:[#allocation5 + $0x40] sm:$0xf]
    %v622 = vld [vmem:[#allocation5 + $0x44] sm:$0xf]
    %v623 = vld [vmem:[#allocation5 + $0x48] sm:$0xf]
    %v624 = vld [vmem:[#allocation5 + $0x4c] sm:$0xf]
    %v625 = vpack.c.bf16 %v619, %v618
    %v626 = vld [vmem:[#allocation2 + $0x4] sm:$0x1]
    %v627 = vperm.slane %v626, 0
    %v632 = vunpack.c.l.b16 %v621
    %v633 = vunpack.c.l.b16 %v622
    %v634 = vunpack.c.l.b16 %v623
    %v635 = vunpack.c.l.b16 %v624
    %v636 = vpack.c.b16 %v633, %v632
    %v637 = vpack.c.b16 %v635, %v634
    %v641 = vsel %vm127, %v625, 0
    %643 = vmatpush.bf16.msra.mxu0 0
    %644 = vmatpush.bf16.msra.mxu0 0
    %645 = vmatpush.bf16.msra.mxu0 0
    %646 = vmatpush.bf16.msra.mxu0 0
    %647 = vmatpush.bf16.msra.mxu0 0
    %648 = vmatpush.bf16.msra.mxu0 0
    %649 = vmatpush.bf16.msra.mxu0 %v637
    %650 = vmatpush.bf16.msra.mxu0 %v636
    %651 = vmatmul.bf16.gmra.mxu0 %v641
    %v652 = vpop.f32.mrf.mxu0
    %v653 = vadd.f32 %v627, %v652
    %v654 = vpop.f32.mrf.mxu0
    %v655 = vadd.f32 %v627, %v654
    %656 = vdwg.mxu0
    %v657 = vperm.slane %v620, 0
    %v658 = vmul.f32 %v653, %v657
    %v659 = vmul.f32 %v655, %v657
    %v660 = vld [vmem:[#allocation5 + $0x50] sm:$0xf]
    %v661 = vld [vmem:[#allocation5 + $0x54] sm:$0xf]
    %v662 = vld [vmem:[#allocation5 + $0x58] sm:$0xf]
    %v663 = vld [vmem:[#allocation5 + $0x5c] sm:$0xf]
    %v664 = vld [vmem:[#allocation5 + $0x60] sm:$0xf]
    %v665 = vld [vmem:[#allocation5 + $0x64] sm:$0xf]
    %v666 = vld [vmem:[#allocation5 + $0x68] sm:$0xf]
    %v667 = vld [vmem:[#allocation5 + $0x6c] sm:$0xf]
    %v668 = vld [vmem:[#allocation5 + $0x70] sm:$0xf]
    %v669 = vld [vmem:[#allocation5 + $0x74] sm:$0xf]
    %v670 = vld [vmem:[#allocation5 + $0x78] sm:$0xf]
    %v671 = vld [vmem:[#allocation5 + $0x7c] sm:$0xf]
    %v672 = vld [vmem:[#allocation5 + $0x80] sm:$0xf]
    %v673 = vld [vmem:[#allocation5 + $0x84] sm:$0xf]
    %v674 = vld [vmem:[#allocation5 + $0x88] sm:$0xf]
    %v675 = vld [vmem:[#allocation5 + $0x8c] sm:$0xf]
    %v676 = vpack.c.bf16 %v659, %v658
    %v677 = vld [vmem:[#allocation2 + $0x6] sm:$0x1]
    %v678 = vperm.slane %v677, 0
    %v695 = vunpack.c.l.b16 %v660
    %v696 = vunpack.c.l.b16 %v661
    %v697 = vunpack.c.l.b16 %v662
    %v698 = vunpack.c.l.b16 %v663
    %v699 = vunpack.c.l.b16 %v664
    %v700 = vunpack.c.l.b16 %v665
    %v701 = vunpack.c.l.b16 %v666
    %v702 = vunpack.c.l.b16 %v667
    %v703 = vunpack.c.l.b16 %v668
    %v704 = vunpack.c.l.b16 %v669
    %v705 = vunpack.c.l.b16 %v670
    %v706 = vunpack.c.l.b16 %v671
    %v707 = vunpack.c.l.b16 %v672
    %v708 = vunpack.c.l.b16 %v673
    %v709 = vunpack.c.l.b16 %v674
    %v710 = vunpack.c.l.b16 %v675
    %v711 = vpack.c.b16 %v696, %v695
    %v712 = vpack.c.b16 %v698, %v697
    %v713 = vpack.c.b16 %v700, %v699
    %v714 = vpack.c.b16 %v702, %v701
    %v715 = vpack.c.b16 %v704, %v703
    %v716 = vpack.c.b16 %v706, %v705
    %v717 = vpack.c.b16 %v708, %v707
    %v718 = vpack.c.b16 %v710, %v709
    %727 = vmatpush.bf16.msra.mxu0 %v718
    %728 = vmatpush.bf16.msra.mxu0 %v717
    %729 = vmatpush.bf16.msra.mxu0 %v716
    %730 = vmatpush.bf16.msra.mxu0 %v715
    %731 = vmatpush.bf16.msra.mxu0 %v714
    %732 = vmatpush.bf16.msra.mxu0 %v713
    %733 = vmatpush.bf16.msra.mxu0 %v712
    %734 = vmatpush.bf16.msra.mxu0 %v711
    %735 = vmatmul.bf16.gmra.mxu0 %v676
    %v736 = vpop.f32.mrf.mxu0
    %v737 = vadd.f32 %v678, %v736
    %v738 = vpop.f32.mrf.mxu0
    %v739 = vadd.f32 %v678, %v738
    %740 = vdwg.mxu0
    %v741 = vadd.f32 %v737, %v658
    %v742 = vadd.f32 %v739, %v659
    %v743 = vld [vmem:[#allocation2 + $0x7] sm:$0x1]
    %v744 = vld [vmem:[#allocation2 + $0x8] sm:$0x1]
    %v745 = vsel %vm127, %v741, 0.0
    %746 = vadd.xlane.f32.xlu0 %v745
    %v747 = vpop.xlane.xlu0 %746
    %v748 = vsel %vm127, %v742, 0.0
    %749 = vadd.xlane.f32.xlu0 %v748
    %v750 = vpop.xlane.xlu0 %749
    %v751 = vmul.f32 %v747, %v564
    %v752 = vmul.f32 %v750, %v564
    %v753 = vsub.f32 %v741, %v751
    %v754 = vsub.f32 %v742, %v752
    %v755 = vmul.f32 %v753, %v753
    %v756 = vmul.f32 %v754, %v754
    %v757 = vsel %vm127, %v755, 0.0
    %758 = vadd.xlane.f32.xlu0 %v757
    %v759 = vpop.xlane.xlu0 %758
    %v760 = vsel %vm127, %v756, 0.0
    %761 = vadd.xlane.f32.xlu0 %v760
    %v762 = vpop.xlane.xlu0 %761
    %v763 = vmul.f32 %v759, %v564
    %v764 = vmul.f32 %v762, %v564
    %v765 = vadd.f32 %v763, 1e-05
    %v766 = vadd.f32 %v764, 1e-05
    %v767 = vrsqrt.pop %v765
    %v768 = vmul.f32 %v767, %v765
    %v769 = vmul.f32 %v768, %v767
    %v770 = vmul.f32 0.5, %v769
    %v771 = vsub.f32 1.5, %v770
    %v772 = vmul.f32 %v767, %v771
    %vm773 = vweird.f32 %v765
    %vm774 = vweird.f32 %v767
    %vm775 = vmor %vm773, %vm774
    %v776 = vsel %vm775, %v767, %v772
    %v777 = vrsqrt.pop %v766
    %v778 = vmul.f32 %v777, %v766
    %v779 = vmul.f32 %v778, %v777
    %v780 = vmul.f32 0.5, %v779
    %v781 = vsub.f32 1.5, %v780
    %v782 = vmul.f32 %v777, %v781
    %vm783 = vweird.f32 %v766
    %vm784 = vweird.f32 %v777
    %vm785 = vmor %vm783, %vm784
    %v786 = vsel %vm785, %v777, %v782
    %v787 = vmul.f32 %v753, %v776
    %v788 = vmul.f32 %v754, %v786
    %v789 = vperm.slane %v743, 0
    %v790 = vmul.f32 %v787, %v789
    %v791 = vmul.f32 %v788, %v789
    %v792 = vperm.slane %v744, 0
    %v793 = vadd.f32 %v790, %v792
    %v794 = vadd.f32 %v791, %v792
    %v795 = vld [vmem:[#allocation5 + $0x90] sm:$0xf]
    %v796 = vld [vmem:[#allocation5 + $0x94] sm:$0xf]
    %v797 = vld [vmem:[#allocation5 + $0x98] sm:$0xf]
    %v798 = vld [vmem:[#allocation5 + $0x9c] sm:$0xf]
    %v799 = vpack.c.bf16 %v794, %v793
    %v804 = vunpack.c.l.b16 %v795
    %v805 = vunpack.c.l.b16 %v796
    %v806 = vunpack.c.l.b16 %v797
    %v807 = vunpack.c.l.b16 %v798
    %v808 = vpack.c.b16 %v805, %v804
    %v809 = vpack.c.b16 %v807, %v806
    %814 = vrot.lane.b32.xlu0 %v658, 64
    %v815 = vpop.permute.xlu0 %814
    %816 = vrot.lane.b32.xlu0 %v659, 64
    %v817 = vpop.permute.xlu0 %816
    %v821 = vsel %vm127, %v799, 0
    %823 = vmatpush.bf16.msra.mxu0 0
    %824 = vmatpush.bf16.msra.mxu0 0
    %825 = vmatpush.bf16.msra.mxu0 0
    %826 = vmatpush.bf16.msra.mxu0 0
    %827 = vmatpush.bf16.msra.mxu0 0
    %828 = vmatpush.bf16.msra.mxu0 0
    %829 = vmatpush.bf16.msra.mxu0 %v809
    %830 = vmatpush.bf16.msra.mxu0 %v808
    %831 = vmatmul.bf16.gmra.mxu0 %v821
    %v832 = vpop.f32.mrf.mxu0
    %v833 = vadd.f32 %v815, %v832
    %v834 = vpop.f32.mrf.mxu0
    %v835 = vadd.f32 %v817, %v834
    %836 = vdwg.mxu0
    %v837 = vadd.f32 %v833, %v793
    %v838 = vadd.f32 %v835, %v794
    %v839 = vsel %vm127, %v837, 0.0
    %840 = vadd.xlane.f32.xlu0 %v839
    %v841 = vpop.xlane.xlu0 %840
    %v842 = vsel %vm127, %v838, 0.0
    %843 = vadd.xlane.f32.xlu0 %v842
    %v844 = vpop.xlane.xlu0 %843
    %v845 = vmul.f32 %v841, %v564
    %v846 = vmul.f32 %v844, %v564
    %v847 = vsub.f32 %v837, %v845
    %v848 = vsub.f32 %v838, %v846
    %v849 = vmul.f32 %v847, %v847
    %v850 = vmul.f32 %v848, %v848
    %v851 = vsel %vm127, %v849, 0.0
    %852 = vadd.xlane.f32.xlu0 %v851
    %v853 = vpop.xlane.xlu0 %852
    %v854 = vsel %vm127, %v850, 0.0
    %855 = vadd.xlane.f32.xlu0 %v854
    %v856 = vpop.xlane.xlu0 %855
    %v857 = vmul.f32 %v853, %v564
    %v858 = vmul.f32 %v856, %v564
    %v859 = vadd.f32 %v857, 1e-05
    %v860 = vadd.f32 %v858, 1e-05
    %v861 = vrsqrt.pop %v859
    %v862 = vmul.f32 %v861, %v859
    %v863 = vmul.f32 %v862, %v861
    %v864 = vmul.f32 0.5, %v863
    %v865 = vsub.f32 1.5, %v864
    %v866 = vmul.f32 %v861, %v865
    %vm867 = vweird.f32 %v859
    %vm868 = vweird.f32 %v861
    %vm869 = vmor %vm867, %vm868
    %v870 = vsel %vm869, %v861, %v866
    %v871 = vrsqrt.pop %v860
    %v872 = vmul.f32 %v871, %v860
    %v873 = vmul.f32 %v872, %v871
    %v874 = vmul.f32 0.5, %v873
    %v875 = vsub.f32 1.5, %v874
    %v876 = vmul.f32 %v871, %v875
    %vm877 = vweird.f32 %v860
    %vm878 = vweird.f32 %v871
    %vm879 = vmor %vm877, %vm878
    %v880 = vsel %vm879, %v871, %v876
    %v881 = vmul.f32 %v847, %v870
    %v882 = vmul.f32 %v848, %v880
    %v883 = vmul.f32 %v881, %v789
    %v884 = vmul.f32 %v882, %v789
    %v885 = vadd.f32 %v883, %v792
    %v886 = vadd.f32 %v884, %v792
    %v887 = vmul.f32 %v885, %v657
    %v888 = vmul.f32 %v886, %v657
    %v889 = vld [vmem:[#allocation5 + $0xa0] sm:$0xf]
    %v890 = vld [vmem:[#allocation5 + $0xa4] sm:$0xf]
    %v891 = vld [vmem:[#allocation5 + $0xa8] sm:$0xf]
    %v892 = vld [vmem:[#allocation5 + $0xac] sm:$0xf]
    %v893 = vpack.c.bf16 %v888, %v887
    %v894 = vld [vmem:[#allocation2 + $0x9] sm:$0x1]
    %v895 = vperm.slane %v894, 0
    %v900 = vunpack.c.l.b16 %v889
    %v901 = vunpack.c.l.b16 %v890
    %v902 = vunpack.c.l.b16 %v891
    %v903 = vunpack.c.l.b16 %v892
    %v904 = vpack.c.b16 %v901, %v900
    %v905 = vpack.c.b16 %v903, %v902
    %v909 = vsel %vm127, %v893, 0
    %911 = vmatpush.bf16.msra.mxu0 0
    %912 = vmatpush.bf16.msra.mxu0 0
    %913 = vmatpush.bf16.msra.mxu0 0
    %914 = vmatpush.bf16.msra.mxu0 0
    %915 = vmatpush.bf16.msra.mxu0 0
    %916 = vmatpush.bf16.msra.mxu0 0
    %917 = vmatpush.bf16.msra.mxu0 %v905
    %918 = vmatpush.bf16.msra.mxu0 %v904
    %919 = vmatmul.bf16.gmra.mxu0 %v909
    %v920 = vpop.f32.mrf.mxu0
    %v921 = vadd.f32 %v895, %v920
    %v922 = vpop.f32.mrf.mxu0
    %v923 = vadd.f32 %v895, %v922
    %924 = vdwg.mxu0
    %v925 = vadd.f32 %v921, %v887
    %v926 = vadd.f32 %v923, %v888
    %v927 = vld [vmem:[#allocation2 + $0xa] sm:$0x1]
    %v928 = vld [vmem:[#allocation2 + $0xb] sm:$0x1]
    %v929 = vsel %vm127, %v925, 0.0
    %930 = vadd.xlane.f32.xlu0 %v929
    %v931 = vpop.xlane.xlu0 %930
    %v932 = vsel %vm127, %v926, 0.0
    %933 = vadd.xlane.f32.xlu0 %v932
    %v934 = vpop.xlane.xlu0 %933
    %v935 = vmul.f32 %v931, %v564
    %v936 = vmul.f32 %v934, %v564
    %v937 = vsub.f32 %v925, %v935
    %v938 = vsub.f32 %v926, %v936
    %v939 = vmul.f32 %v937, %v937
    %v940 = vmul.f32 %v938, %v938
    %v941 = vsel %vm127, %v939, 0.0
    %942 = vadd.xlane.f32.xlu0 %v941
    %v943 = vpop.xlane.xlu0 %942
    %v944 = vsel %vm127, %v940, 0.0
    %945 = vadd.xlane.f32.xlu0 %v944
    %v946 = vpop.xlane.xlu0 %945
    %v947 = vmul.f32 %v943, %v564
    %v948 = vmul.f32 %v946, %v564
    %v949 = vadd.f32 %v947, 1e-05
    %v950 = vadd.f32 %v948, 1e-05
    %v951 = vrsqrt.pop %v949
    %v952 = vmul.f32 %v951, %v949
    %v953 = vmul.f32 %v952, %v951
    %v954 = vmul.f32 0.5, %v953
    %v955 = vsub.f32 1.5, %v954
    %v956 = vmul.f32 %v951, %v955
    %vm957 = vweird.f32 %v949
    %vm958 = vweird.f32 %v951
    %vm959 = vmor %vm957, %vm958
    %v960 = vsel %vm959, %v951, %v956
    %v961 = vrsqrt.pop %v950
    %v962 = vmul.f32 %v961, %v950
    %v963 = vmul.f32 %v962, %v961
    %v964 = vmul.f32 0.5, %v963
    %v965 = vsub.f32 1.5, %v964
    %v966 = vmul.f32 %v961, %v965
    %vm967 = vweird.f32 %v950
    %vm968 = vweird.f32 %v961
    %vm969 = vmor %vm967, %vm968
    %v970 = vsel %vm969, %v961, %v966
    %v971 = vmul.f32 %v937, %v960
    %v972 = vmul.f32 %v938, %v970
    %v973 = vperm.slane %v927, 0
    %v974 = vmul.f32 %v971, %v973
    %v975 = vmul.f32 %v972, %v973
    %v976 = vperm.slane %v928, 0
    %v977 = vadd.f32 %v974, %v976
    %v978 = vadd.f32 %v975, %v976
    %v979 = vld [vmem:[#allocation5 + $0xb0] sm:$0xf]
    %v980 = vld [vmem:[#allocation5 + $0xb4] sm:$0xf]
    %v981 = vld [vmem:[#allocation5 + $0xb8] sm:$0xf]
    %v982 = vld [vmem:[#allocation5 + $0xbc] sm:$0xf]
    %v983 = vpack.c.bf16 %v978, %v977
    %v984 = vld [vmem:[#allocation2 + $0xc] sm:$0x1]
    %v985 = vperm.slane %v984, 0
    %v990 = vunpack.c.l.b16 %v979
    %v991 = vunpack.c.l.b16 %v980
    %v992 = vunpack.c.l.b16 %v981
    %v993 = vunpack.c.l.b16 %v982
    %v994 = vpack.c.b16 %v991, %v990
    %v995 = vpack.c.b16 %v993, %v992
    %v999 = vsel %vm127, %v983, 0
    %1001 = vmatpush.bf16.msra.mxu0 0
    %1002 = vmatpush.bf16.msra.mxu0 0
    %1003 = vmatpush.bf16.msra.mxu0 0
    %1004 = vmatpush.bf16.msra.mxu0 0
    %1005 = vmatpush.bf16.msra.mxu0 0
    %1006 = vmatpush.bf16.msra.mxu0 0
    %1007 = vmatpush.bf16.msra.mxu0 %v995
    %1008 = vmatpush.bf16.msra.mxu0 %v994
    %1009 = vmatmul.bf16.gmra.mxu0 %v999
    %v1010 = vpop.f32.mrf.mxu0
    %v1011 = vadd.f32 %v985, %v1010
    %v1012 = vpop.f32.mrf.mxu0
    %v1013 = vadd.f32 %v985, %v1012
    %1014 = vdwg.mxu0
    %1015 = vst [vmem:[%s3] sm:$0xff] %v1011
    %1016 = vst [vmem:[%s3 + $0x8] sm:$0xff] %v1013
    %v1017 = vld [vmem:[#allocation5 + $0xc0] sm:$0xf]
    %v1018 = vld [vmem:[#allocation5 + $0xc4] sm:$0xf]
    %v1019 = vld [vmem:[#allocation5 + $0xc8] sm:$0xf]
    %v1020 = vld [vmem:[#allocation5 + $0xcc] sm:$0xf]
    %v1021 = vpack.c.bf16 %v608, %v608
    %v1022 = vld [vmem:[#allocation2 + $0xd] sm:$0x1]
    %v1023 = vperm.slane %v1022, 0
    %v1025 = vrot.slane %v1021, 3
    %v1030 = vunpack.c.l.b16 %v1017
    %v1031 = vunpack.c.l.b16 %v1018
    %v1032 = vunpack.c.l.b16 %v1019
    %v1033 = vunpack.c.l.b16 %v1020
    %v1034 = vpack.c.b16 %v1031, %v1030
    %v1035 = vpack.c.b16 %v1033, %v1032
    %v1039 = vsel %vm127, %v1025, 0
    %1041 = vmatpush.bf16.msra.mxu0 0
    %1042 = vmatpush.bf16.msra.mxu0 0
    %1043 = vmatpush.bf16.msra.mxu0 0
    %1044 = vmatpush.bf16.msra.mxu0 0
    %1045 = vmatpush.bf16.msra.mxu0 0
    %1046 = vmatpush.bf16.msra.mxu0 0
    %1047 = vmatpush.bf16.msra.mxu0 %v1035
    %1048 = vmatpush.bf16.msra.mxu0 %v1034
    %1049 = vmatmul.bf16.gmra.mxu0 %v1039
    %v1050 = vpop.f32.mrf.mxu0
    %v1051 = vadd.f32 %v1023, %v1050
    %v1052 = vpop.f32.mrf.mxu0
    %1053 = vdwg.mxu0
    %1054 = vst [vmem:[#allocation7] sm:$0x3] %v1051
    // Predicated region
    $region22: #{hybrid_forward.1} parent=1 // pred_check
      _
    $region23: #{hybrid_forward.1} parent=1 // pred_check_branch
      %1056 = sbr.rel (0) target = $region25
    $region24: #{hybrid_forward.1} parent=1 // pred_region
      _
    $region25: #{hybrid_forward.1} parent=1 // pred_fallthru
      _
    // Predicated region
    $region26: #{hybrid_forward.1} parent=1 // pred_check
      _
    $region27: #{hybrid_forward.1} parent=1 // pred_check_branch
      %1058 = sbr.rel (0) target = $region29
    $region28: #{hybrid_forward.1} parent=1 // pred_region
      %1060 = vsyncadd [#allocation4], 0
      %s1062 = sshll.u32 [#allocation7], 4
      %s1063 = int_to_ptr.vmem [resolvable:$true] %s1062
      %s1064 = sshll.u32 %s4, 4
      %s1065 = int_to_ptr.hbm [resolvable:$true] %s1064
      %1067 = dma.vmem_to_hbm [thread:$0]  %s1063, 32, %s1065, [#allocation4]
    $region29: #{hybrid_forward.1} parent=1 // pred_fallthru
      _
    // Predicated region
    $region30: #{hybrid_forward.1} parent=1 // pred_check
      _
    $region31: #{hybrid_forward.1} parent=1 // pred_check_branch
      %1069 = sbr.rel (0) target = $region33
    $region32: #{hybrid_forward.1} parent=1 // pred_region
      _
    $region33: #{hybrid_forward.1} parent=1 // pred_fallthru
      _
    // Predicated region
    $region34: #{hybrid_forward.1} parent=1 // pred_check
      _
    $region35: #{hybrid_forward.1} parent=1 // pred_check_branch
      %1071 = sbr.rel (0) target = $region37
    $region36: #{hybrid_forward.1} parent=1 // pred_region
      %1073 = dma.done [#allocation4], 32
    $region37: #{hybrid_forward.1} parent=1 // pred_fallthru
      _
    %1074 = vsyncpa [#allocation3], 1
    %1075 = vsyncpa [#allocation6], 1
    %1076 = vsyncpa [#allocation4], 1

</llo_original>
